<compile_context>
chip_gen: v7x
topology: tpu7x:2x2x1
jax: 0.10.0
libtpu: 0.0.40
codegen_flags: <defaults>
</compile_context>

<pallas_src>
import jax
import jax.numpy as jnp
from jax import lax
from jax.experimental import pallas as pl
from jax.experimental.pallas import tpu as pltpu


# ----------------------------- Pallas kernel ------------------------------ #
def lstm_bidir_fused_kernel(lens_ref, x_ref, wih_ref, whh_ref, b_ref,
                            out_ref, hN_ref):
    """Fused bidirectional LSTM; both directions packed along the lane axis.

    lens_ref : (Bp, 1)     int32  valid length per (padded) batch row
    x_ref    : (T*Bp, E)   bf16   time-major flattened embeddings
    wih_ref  : (E, 8H)     bf16   packed input->gate weights (both directions)
    whh_ref  : (2H, 8H)    bf16   block-diagonal packed hidden->gate weights
    b_ref    : (1, 8H)     f32    packed b_ih + b_hh (both directions)
    out_ref  : (T*Bp, 2H)  f32    row block t: [fwd h_t | bwd h_t], 0 past len
    hN_ref   : (Bp, 2H)    f32    packed final hidden state [h_fwd | h_bwd]
    """
    TBp, _ = x_ref.shape
    H8 = wih_ref.shape[1]
    H = H8 // 8
    H2 = 2 * H
    Bp = lens_ref.shape[0]
    T = TBp // Bp

    lens = lens_ref[...]                                   # (Bp, 1) int32
    w_hh = whh_ref[...]                                    # (2H, 8H) bf16

    # ---- hoisted input projection: ONE lane-dense bf16 MXU call -----------
    # Only h @ W_hh remains on the serial critical path.
    gates_x = (jnp.dot(x_ref[...], wih_ref[...],
                       preferred_element_type=jnp.float32)
               + b_ref[...])                               # (T*Bp, 8H) f32
    # TODO(synk): for production T*B*E this should be time-chunked (emit_pipeline)
    # to bound the VMEM working set on v7x (64 MiB); fine at these shapes.

    # ---- masks hoisted out of the recurrence (no per-step compare/broadcast) --
    # Packed gate columns alternate [ *_f | *_b ] blocks of width H.
    col8 = lax.broadcasted_iota(jnp.int32, (Bp, H8), 1)
    fwd_col = (col8 % H2) < H                              # (Bp, 8H) bool

    # Per-STEP validity mask already broadcast to state width:
    #   step s, cols 0:H  -> fwd time  s        < len
    #   step s, cols H:2H -> bwd time (T-1-s)   < len
    step = lax.broadcasted_iota(jnp.int32, (T, Bp, H2), 0)
    scol = lax.broadcasted_iota(jnp.int32, (T, Bp, H2), 2)
    t_eff = jnp.where(scol < H, step, (T - 1) - step)
    valid = t_eff < lens[None, :, :]                       # (T, Bp, 2H) bool

    # ---- serial recurrence: fwd (t=s) and bwd (t=T-1-s) advance together -----
    h = jnp.zeros((Bp, H2), jnp.float32)                   # init_hidden(): zeros
    c = jnp.zeros((Bp, H2), jnp.float32)
    # Fully unrolled (T = cfg.TEXT.WORDS_NUM is small and static) -> static
    # loads/stores; for much larger T switch to lax.fori_loop(unroll=k) + pl.ds.
    for s in range(T):
        rs = T - 1 - s                                     # backward time index
        # Select fwd columns from time-s row block, bwd columns from time-rs block.
        gx = jnp.where(fwd_col,
                       gates_x[s * Bp:(s + 1) * Bp, :],
                       gates_x[rs * Bp:(rs + 1) * Bp, :])  # (Bp, 8H)
        gates = gx + jnp.dot(h.astype(jnp.bfloat16), w_hh,
                             preferred_element_type=jnp.float32)   # (Bp, 8H) f32

        sig = jax.nn.sigmoid(gates[:, 0:6 * H])            # i, f, o (both dirs)
        i = sig[:, 0 * H2:1 * H2]                          # (Bp, 2H)
        f = sig[:, 1 * H2:2 * H2]
        o = sig[:, 2 * H2:3 * H2]
        g = jnp.tanh(gates[:, 6 * H:8 * H])                # (Bp, 2H)

        c_new = f * c + i * g                              # f32 cell update
        h_new = o * jnp.tanh(c_new)

        m = valid[s]                                       # (Bp, 2H) bool (slice only)
        h = jnp.where(m, h_new, h)                         # freeze state past seq end
        c = jnp.where(m, c_new, c)
        h_out = jnp.where(m, h_new, 0.0)                   # packed-seq zero padding
        out_ref[s * Bp:(s + 1) * Bp, 0:H] = h_out[:, 0:H]        # fwd @ time s
        out_ref[rs * Bp:(rs + 1) * Bp, H:H2] = h_out[:, H:H2]    # bwd @ time rs

    hN_ref[...] = h                                        # already sent_emb layout


def run_bidir_lstm(x_flat, lens, w_ih, w_hh, bias):
    """Single fused pallas_call covering both directions."""
    TBp, E = x_flat.shape
    H8 = w_ih.shape[1]
    H = H8 // 8
    Bp = lens.shape[0]
    return pl.pallas_call(
        lstm_bidir_fused_kernel,
        grid=(1,),
        in_specs=[
            pl.BlockSpec((Bp, 1), lambda d: (0, 0)),        # lens
            pl.BlockSpec((TBp, E), lambda d: (0, 0)),       # x (bf16)
            pl.BlockSpec((E, H8), lambda d: (0, 0)),        # packed W_ih (bf16)
            pl.BlockSpec((2 * H, H8), lambda d: (0, 0)),    # block-diag W_hh (bf16)
            pl.BlockSpec((1, H8), lambda d: (0, 0)),        # packed bias (f32)
        ],
        out_specs=(
            pl.BlockSpec((TBp, 2 * H), lambda d: (0, 0)),   # per-step hidden states
            pl.BlockSpec((Bp, 2 * H), lambda d: (0, 0)),    # final hidden state
        ),
        out_shape=(
            jax.ShapeDtypeStruct((TBp, 2 * H), jnp.float32),
            jax.ShapeDtypeStruct((Bp, 2 * H), jnp.float32),
        ),
        compiler_params=pltpu.CompilerParams(
            dimension_semantics=("arbitrary",),
            vmem_limit_bytes=32 * 1024 * 1024),
    )(lens, x_flat, w_ih, w_hh, bias)


# ------------------------------ JAX wrapper -------------------------------- #
@jax.jit
def rnn_encoder_forward(captions, cap_lens, params):
    """Forward pass of RNN_ENCODER (eval mode, LSTM, bidirectional, 1 layer).

    Returns (words_emb, sent_emb) with shapes (B, 2H, T), (B, 2H).
    """
    emb_table = params["emb"]
    B, T = captions.shape
    H8 = params["w_ih"].shape[1]
    H = H8 // 8

    # TODO(synk): nn.Dropout(0.5) on the embedding is stochastic at train time;
    # eval-mode identity here.

    # Pad batch to a multiple of 8 sublanes; padded rows get length 0 so their
    # state stays zero and outputs are zero.
    Bp = ((B + 7) // 8) * 8
    pad = Bp - B
    cap_p = jnp.pad(captions, ((0, pad), (0, 0)))
    lens_p = jnp.pad(cap_lens.astype(jnp.int32), (0, pad))[:, None]   # (Bp, 1)

    # Time-major embedding lookup: transpose the cheap int32 ids BEFORE the gather
    # so no transpose of the embedded activations is needed; feed the MXU in bf16.
    ids_tm = jnp.transpose(cap_p, (1, 0)).reshape(-1)                 # (T*Bp,)
    x_flat = jnp.take(emb_table, ids_tm, axis=0).astype(jnp.bfloat16)  # (T*Bp, E)

    out, hN = run_bidir_lstm(x_flat, lens_p, params["w_ih"],
                             params["w_hh"], params["b"])

    # out rows: t*Bp + b, cols [fwd h | bwd h]  ->  words_emb (B, 2H, T)
    out = out.reshape(T, Bp, 2 * H)[:, :B, :]
    words_emb = jnp.transpose(out, (1, 2, 0))                         # (B, 2H, T)

    # hidden[0].transpose(0,1).contiguous().view(-1, H*num_directions):
    # hN is already packed as [h_fwd | h_bwd] per batch row.
    sent_emb = hN[:B]                                                 # (B, 2H)
    return words_emb, sent_emb


# --------------------------- parameter creation ----------------------------- #
def _pack_bidir_lstm_params(w_ih_f, w_hh_f, b_f, w_ih_b, w_hh_b, b_b):
    """Pack PyTorch-layout per-direction LSTM params into the fused lane layout.

    PyTorch row-block order of weight_ih/weight_hh/bias is [i, f, g, o] (each H).
    Packed column order (8H): [ i_f i_b | f_f f_b | o_f o_b | g_f g_b ].
    W_hh is made block-diagonal so h_f only feeds *_f columns and h_b only *_b.
    """
    H4 = w_ih_f.shape[0]
    H = H4 // 4
    z = jnp.zeros((H, H), jnp.float32)
    order = (0, 1, 3, 2)          # kernel gate order i, f, o, g <- torch i, f, g, o
    wih_cols, whh_cols, b_cols = [], [], []
    for gate in order:
        sl = slice(gate * H, (gate + 1) * H)
        wih_cols += [w_ih_f[sl].T, w_ih_b[sl].T]                     # (E, H) each
        b_cols += [b_f[sl], b_b[sl]]
        top = jnp.concatenate([w_hh_f[sl].T, z], axis=1)             # h_f -> gate_f
        bot = jnp.concatenate([z, w_hh_b[sl].T], axis=1)             # h_b -> gate_b
        whh_cols.append(jnp.concatenate([top, bot], axis=0))         # (2H, 2H)
    w_ih = jnp.concatenate(wih_cols, axis=1).astype(jnp.bfloat16)    # (E, 8H)
    w_hh = jnp.concatenate(whh_cols, axis=1).astype(jnp.bfloat16)    # (2H, 8H)
    b = jnp.concatenate(b_cols, axis=0)[None, :]                     # (1, 8H) f32
    return w_ih, w_hh, b


def init_params(key, ntoken, ninput, nhidden_total):
    """Deterministic synthetic init mirroring the PyTorch module's shapes."""
    H = nhidden_total // 2          # per-direction hidden (bidirectional)
    E = ninput
    k_emb, *ks = jax.random.split(key, 9)
    initrange = 0.1
    emb = jax.random.uniform(k_emb, (ntoken, E), jnp.float32,
                             -initrange, initrange)
    bound = 1.0 / (H ** 0.5)

    def u(k, shape):
        return jax.random.uniform(k, shape, jnp.float32, -bound, bound)

    w_ih_f = u(ks[0], (4 * H, E))                  # weight_ih_l0
    w_hh_f = u(ks[1], (4 * H, H))                  # weight_hh_l0
    b_f = u(ks[2], (4 * H,)) + u(ks[3], (4 * H,))  # bias_ih_l0 + bias_hh_l0
    w_ih_b = u(ks[4], (4 * H, E))                  # *_reverse
    w_hh_b = u(ks[5], (4 * H, H))
    b_b = u(ks[6], (4 * H,)) + u(ks[7], (4 * H,))

    w_ih, w_hh, b = _pack_bidir_lstm_params(w_ih_f, w_hh_f, b_f,
                                            w_ih_b, w_hh_b, b_b)
    return {"emb": emb, "w_ih": w_ih, "w_hh": w_hh, "b": b}


# ----------------------------------- main ----------------------------------- #
if __name__ == "__main__":
    # Small config consistent with the module: cfg.TEXT.WORDS_NUM = T = 8,
    # cfg.RNN_TYPE = 'LSTM', ntoken = 100, ninput = 64, nhidden = 32 (=> 16/dir).
    ntoken, ninput, nhidden, B, T = 100, 64, 32, 4, 8

    key = jax.random.PRNGKey(0)
    k_param, k_cap = jax.random.split(key)
    params = init_params(k_param, ntoken, ninput, nhidden)

    captions = jax.random.randint(k_cap, (B, T), 0, ntoken, dtype=jnp.int32)
    # pack_padded_sequence requires lengths sorted in decreasing order.
    cap_lens = jnp.array([8, 6, 5, 3], dtype=jnp.int32)

    words_emb, sent_emb = rnn_encoder_forward(captions, cap_lens, params)
    jax.block_until_ready((words_emb, sent_emb))

    assert words_emb.shape == (B, nhidden, T), words_emb.shape
    assert sent_emb.shape == (B, nhidden), sent_emb.shape
    print("KERNEL_OK")
</pallas_src>

<mosaic_0001>
module attributes {stable_mosaic.version = 11 : i64} {
  func.func @lstm_bidir_fused_kernel(%arg0: i32, %arg1: memref<8x1xi32, #tpu.memory_space<vmem>>, %arg2: memref<64x64xbf16, #tpu.memory_space<vmem>>, %arg3: memref<64x128xbf16, #tpu.memory_space<vmem>>, %arg4: memref<32x128xbf16, #tpu.memory_space<vmem>>, %arg5: memref<1x128xf32, #tpu.memory_space<vmem>>, %arg6: memref<64x32xf32, #tpu.memory_space<vmem>>, %arg7: memref<8x32xf32, #tpu.memory_space<vmem>>) attributes {dimension_semantics = [#tpu.dimension_semantics<arbitrary>], iteration_bounds = array<i64: 1>, scalar_prefetch = 0 : i64, scratch_operands = 0 : i64, tpu.core_type = #tpu.core_type<tc>, window_params = [{pipeline_mode = #tpu.pipeline_mode<synchronous>, transform_indices = @transform_0, window_bounds = array<i64: 8, 1>}, {pipeline_mode = #tpu.pipeline_mode<synchronous>, transform_indices = @transform_1, window_bounds = array<i64: 64, 64>}, {pipeline_mode = #tpu.pipeline_mode<synchronous>, transform_indices = @transform_2, window_bounds = array<i64: 64, 128>}, {pipeline_mode = #tpu.pipeline_mode<synchronous>, transform_indices = @transform_3, window_bounds = array<i64: 32, 128>}, {pipeline_mode = #tpu.pipeline_mode<synchronous>, transform_indices = @transform_4, window_bounds = array<i64: 1, 128>}, {pipeline_mode = #tpu.pipeline_mode<synchronous>, transform_indices = @transform_5, window_bounds = array<i64: 64, 32>}, {pipeline_mode = #tpu.pipeline_mode<synchronous>, transform_indices = @transform_6, window_bounds = array<i64: 8, 32>}]} {
    %c0 = arith.constant 0 : index
    %c0_0 = arith.constant 0 : index
    %0 = vector.load %arg1[%c0, %c0_0] : memref<8x1xi32, #tpu.memory_space<vmem>>, vector<8x1xi32>
    %c0_1 = arith.constant 0 : index
    %c0_2 = arith.constant 0 : index
    %1 = vector.load %arg4[%c0_1, %c0_2] : memref<32x128xbf16, #tpu.memory_space<vmem>>, vector<32x128xbf16>
    %c0_3 = arith.constant 0 : index
    %c0_4 = arith.constant 0 : index
    %2 = vector.load %arg2[%c0_3, %c0_4] : memref<64x64xbf16, #tpu.memory_space<vmem>>, vector<64x64xbf16>
    %c0_5 = arith.constant 0 : index
    %c0_6 = arith.constant 0 : index
    %3 = vector.load %arg3[%c0_5, %c0_6] : memref<64x128xbf16, #tpu.memory_space<vmem>>, vector<64x128xbf16>
    %cst = arith.constant dense<0.000000e+00> : vector<64x128xf32>
    %4 = tpu.matmul %2, %3, %cst {dimension_numbers = #tpu.dot_dimension_numbers<[1], [0], [0], [1], [0, 0, 1, 1], [], []>} : vector<64x64xbf16>, vector<64x128xbf16>, vector<64x128xf32> -> vector<64x128xf32>
    %c0_7 = arith.constant 0 : index
    %c0_8 = arith.constant 0 : index
    %5 = vector.load %arg5[%c0_7, %c0_8] : memref<1x128xf32, #tpu.memory_space<vmem>>, vector<1x128xf32>
    %6 = vector.broadcast %5 : vector<1x128xf32> to vector<64x128xf32>
    %7 = arith.addf %4, %6 : vector<64x128xf32>
    %8 = tpu.iota {dimensions = array<i32: 1>} : vector<8x128xi32>
    %c32_i32 = arith.constant 32 : i32
    %c0_i32 = arith.constant 0 : i32
    %9 = arith.cmpi eq, %c32_i32, %c0_i32 : i32
    %c1_i32 = arith.constant 1 : i32
    %10 = arith.select %9, %c1_i32, %c32_i32 : i32
    %11 = vector.broadcast %10 : i32 to vector<8x128xi32>
    %12 = arith.remsi %8, %11 : vector<8x128xi32>
    %c0_i32_9 = arith.constant 0 : i32
    %13 = vector.broadcast %c0_i32_9 : i32 to vector<8x128xi32>
    %14 = arith.cmpi ne, %12, %13 : vector<8x128xi32>
    %c0_i32_10 = arith.constant 0 : i32
    %15 = vector.broadcast %c0_i32_10 : i32 to vector<8x128xi32>
    %16 = arith.cmpi slt, %12, %15 : vector<8x128xi32>
    %c0_i32_11 = arith.constant 0 : i32
    %17 = arith.cmpi slt, %10, %c0_i32_11 : i32
    %18 = vector.broadcast %17 : i1 to vector<8x128xi1>
    %19 = vector.broadcast %18 : vector<8x128xi1> to vector<8x128xi1>
    %20 = arith.xori %16, %19 : vector<8x128xi1>
    %21 = arith.andi %20, %14 : vector<8x128xi1>
    %22 = vector.broadcast %10 : i32 to vector<8x128xi32>
    %23 = arith.addi %12, %22 : vector<8x128xi32>
    %24 = arith.select %21, %23, %12 : vector<8x128xi1>, vector<8x128xi32>
    %c16_i32 = arith.constant 16 : i32
    %25 = vector.broadcast %c16_i32 : i32 to vector<8x128xi32>
    %26 = arith.cmpi slt, %24, %25 : vector<8x128xi32>
    %27 = tpu.iota {dimensions = array<i32: 0>} : vector<8x8x32xi32>
    %28 = tpu.iota {dimensions = array<i32: 2>} : vector<8x8x32xi32>
    %c16_i32_12 = arith.constant 16 : i32
    %29 = vector.broadcast %c16_i32_12 : i32 to vector<8x8x32xi32>
    %30 = arith.cmpi slt, %28, %29 : vector<8x8x32xi32>
    %c7_i32 = arith.constant 7 : i32
    %31 = vector.broadcast %c7_i32 : i32 to vector<8x8x32xi32>
    %32 = arith.subi %31, %27 : vector<8x8x32xi32>
    %33 = arith.select %30, %27, %32 : vector<8x8x32xi1>, vector<8x8x32xi32>
    %34 = vector.shape_cast %0 : vector<8x1xi32> to vector<1x8x1xi32>
    %35 = vector.broadcast %34 : vector<1x8x1xi32> to vector<8x8x32xi32>
    %36 = arith.cmpi slt, %33, %35 : vector<8x8x32xi32>
    %cst_13 = arith.constant 0.000000e+00 : f32
    %37 = vector.broadcast %cst_13 : f32 to vector<8x32xf32>
    %cst_14 = arith.constant 0.000000e+00 : f32
    %38 = vector.broadcast %cst_14 : f32 to vector<8x32xf32>
    %39 = vector.extract_strided_slice %7 {offsets = [0, 0], sizes = [8, 128], strides = [1, 1]} : vector<64x128xf32> to vector<8x128xf32>
    %40 = vector.extract_strided_slice %7 {offsets = [56, 0], sizes = [8, 128], strides = [1, 1]} : vector<64x128xf32> to vector<8x128xf32>
    %41 = arith.select %26, %39, %40 : vector<8x128xi1>, vector<8x128xf32>
    %42 = arith.truncf %37 : vector<8x32xf32> to vector<8x32xbf16>
    %cst_15 = arith.constant dense<0.000000e+00> : vector<8x128xf32>
    %43 = tpu.matmul %42, %1, %cst_15 {dimension_numbers = #tpu.dot_dimension_numbers<[1], [0], [0], [1], [0, 0, 1, 1], [], []>} : vector<8x32xbf16>, vector<32x128xbf16>, vector<8x128xf32> -> vector<8x128xf32>
    %44 = arith.addf %41, %43 : vector<8x128xf32>
    %45 = vector.extract_strided_slice %44 {offsets = [0, 0], sizes = [8, 96], strides = [1, 1]} : vector<8x128xf32> to vector<8x96xf32>
    %46 = arith.negf %45 : vector<8x96xf32>
    %47 = math.exp %46 : vector<8x96xf32>
    %cst_16 = arith.constant 1.000000e+00 : f32
    %48 = vector.broadcast %cst_16 : f32 to vector<8x96xf32>
    %49 = arith.addf %48, %47 : vector<8x96xf32>
    %50 = arith.divf %48, %49 : vector<8x96xf32>
    %51 = vector.extract_strided_slice %50 {offsets = [0, 0], sizes = [8, 32], strides = [1, 1]} : vector<8x96xf32> to vector<8x32xf32>
    %52 = vector.extract_strided_slice %50 {offsets = [0, 32], sizes = [8, 32], strides = [1, 1]} : vector<8x96xf32> to vector<8x32xf32>
    %53 = vector.extract_strided_slice %50 {offsets = [0, 64], sizes = [8, 32], strides = [1, 1]} : vector<8x96xf32> to vector<8x32xf32>
    %54 = vector.extract_strided_slice %44 {offsets = [0, 96], sizes = [8, 32], strides = [1, 1]} : vector<8x128xf32> to vector<8x32xf32>
    %55 = math.tanh %54 : vector<8x32xf32>
    %56 = arith.mulf %52, %38 : vector<8x32xf32>
    %57 = arith.mulf %51, %55 : vector<8x32xf32>
    %58 = arith.addf %56, %57 : vector<8x32xf32>
    %59 = math.tanh %58 : vector<8x32xf32>
    %60 = arith.mulf %53, %59 : vector<8x32xf32>
    %61 = vector.extract_strided_slice %36 {offsets = [0, 0, 0], sizes = [1, 8, 32], strides = [1, 1, 1]} : vector<8x8x32xi1> to vector<1x8x32xi1>
    %62 = vector.shape_cast %61 : vector<1x8x32xi1> to vector<8x32xi1>
    %63 = arith.select %62, %60, %37 : vector<8x32xi1>, vector<8x32xf32>
    %64 = arith.select %62, %58, %38 : vector<8x32xi1>, vector<8x32xf32>
    %cst_17 = arith.constant 0.000000e+00 : f32
    %65 = vector.broadcast %cst_17 : f32 to vector<8x32xf32>
    %66 = arith.select %62, %60, %65 : vector<8x32xi1>, vector<8x32xf32>
    %67 = vector.extract_strided_slice %66 {offsets = [0, 0], sizes = [8, 16], strides = [1, 1]} : vector<8x32xf32> to vector<8x16xf32>
    %c0_18 = arith.constant 0 : index
    %c0_19 = arith.constant 0 : index
    %68 = vector.load %arg6[%c0_18, %c0_19] : memref<64x32xf32, #tpu.memory_space<vmem>>, vector<8x16xf32>
    tpu.vector_store %arg6[%c0_18, %c0_19], %67 {strides = array<i32>} : memref<64x32xf32, #tpu.memory_space<vmem>>, vector<8x16xf32>,
    %69 = vector.extract_strided_slice %66 {offsets = [0, 16], sizes = [8, 16], strides = [1, 1]} : vector<8x32xf32> to vector<8x16xf32>
    %c56 = arith.constant 56 : index
    %c16 = arith.constant 16 : index
    %70 = vector.load %arg6[%c56, %c16] : memref<64x32xf32, #tpu.memory_space<vmem>>, vector<8x16xf32>
    tpu.vector_store %arg6[%c56, %c16], %69 {strides = array<i32>} : memref<64x32xf32, #tpu.memory_space<vmem>>, vector<8x16xf32>,
    %71 = vector.extract_strided_slice %7 {offsets = [8, 0], sizes = [8, 128], strides = [1, 1]} : vector<64x128xf32> to vector<8x128xf32>
    %72 = vector.extract_strided_slice %7 {offsets = [48, 0], sizes = [8, 128], strides = [1, 1]} : vector<64x128xf32> to vector<8x128xf32>
    %73 = arith.select %26, %71, %72 : vector<8x128xi1>, vector<8x128xf32>
    %74 = arith.truncf %63 : vector<8x32xf32> to vector<8x32xbf16>
    %cst_20 = arith.constant dense<0.000000e+00> : vector<8x128xf32>
    %75 = tpu.matmul %74, %1, %cst_20 {dimension_numbers = #tpu.dot_dimension_numbers<[1], [0], [0], [1], [0, 0, 1, 1], [], []>} : vector<8x32xbf16>, vector<32x128xbf16>, vector<8x128xf32> -> vector<8x128xf32>
    %76 = arith.addf %73, %75 : vector<8x128xf32>
    %77 = vector.extract_strided_slice %76 {offsets = [0, 0], sizes = [8, 96], strides = [1, 1]} : vector<8x128xf32> to vector<8x96xf32>
    %78 = arith.negf %77 : vector<8x96xf32>
    %79 = math.exp %78 : vector<8x96xf32>
    %cst_21 = arith.constant 1.000000e+00 : f32
    %80 = vector.broadcast %cst_21 : f32 to vector<8x96xf32>
    %81 = arith.addf %80, %79 : vector<8x96xf32>
    %82 = arith.divf %80, %81 : vector<8x96xf32>
    %83 = vector.extract_strided_slice %82 {offsets = [0, 0], sizes = [8, 32], strides = [1, 1]} : vector<8x96xf32> to vector<8x32xf32>
    %84 = vector.extract_strided_slice %82 {offsets = [0, 32], sizes = [8, 32], strides = [1, 1]} : vector<8x96xf32> to vector<8x32xf32>
    %85 = vector.extract_strided_slice %82 {offsets = [0, 64], sizes = [8, 32], strides = [1, 1]} : vector<8x96xf32> to vector<8x32xf32>
    %86 = vector.extract_strided_slice %76 {offsets = [0, 96], sizes = [8, 32], strides = [1, 1]} : vector<8x128xf32> to vector<8x32xf32>
    %87 = math.tanh %86 : vector<8x32xf32>
    %88 = arith.mulf %84, %64 : vector<8x32xf32>
    %89 = arith.mulf %83, %87 : vector<8x32xf32>
    %90 = arith.addf %88, %89 : vector<8x32xf32>
    %91 = math.tanh %90 : vector<8x32xf32>
    %92 = arith.mulf %85, %91 : vector<8x32xf32>
    %93 = vector.extract_strided_slice %36 {offsets = [1, 0, 0], sizes = [1, 8, 32], strides = [1, 1, 1]} : vector<8x8x32xi1> to vector<1x8x32xi1>
    %94 = vector.shape_cast %93 : vector<1x8x32xi1> to vector<8x32xi1>
    %95 = arith.select %94, %92, %63 : vector<8x32xi1>, vector<8x32xf32>
    %96 = arith.select %94, %90, %64 : vector<8x32xi1>, vector<8x32xf32>
    %cst_22 = arith.constant 0.000000e+00 : f32
    %97 = vector.broadcast %cst_22 : f32 to vector<8x32xf32>
    %98 = arith.select %94, %92, %97 : vector<8x32xi1>, vector<8x32xf32>
    %99 = vector.extract_strided_slice %98 {offsets = [0, 0], sizes = [8, 16], strides = [1, 1]} : vector<8x32xf32> to vector<8x16xf32>
    %c8 = arith.constant 8 : index
    %c0_23 = arith.constant 0 : index
    %100 = vector.load %arg6[%c8, %c0_23] : memref<64x32xf32, #tpu.memory_space<vmem>>, vector<8x16xf32>
    tpu.vector_store %arg6[%c8, %c0_23], %99 {strides = array<i32>} : memref<64x32xf32, #tpu.memory_space<vmem>>, vector<8x16xf32>,
    %101 = vector.extract_strided_slice %98 {offsets = [0, 16], sizes = [8, 16], strides = [1, 1]} : vector<8x32xf32> to vector<8x16xf32>
    %c48 = arith.constant 48 : index
    %c16_24 = arith.constant 16 : index
    %102 = vector.load %arg6[%c48, %c16_24] : memref<64x32xf32, #tpu.memory_space<vmem>>, vector<8x16xf32>
    tpu.vector_store %arg6[%c48, %c16_24], %101 {strides = array<i32>} : memref<64x32xf32, #tpu.memory_space<vmem>>, vector<8x16xf32>,
    %103 = vector.extract_strided_slice %7 {offsets = [16, 0], sizes = [8, 128], strides = [1, 1]} : vector<64x128xf32> to vector<8x128xf32>
    %104 = vector.extract_strided_slice %7 {offsets = [40, 0], sizes = [8, 128], strides = [1, 1]} : vector<64x128xf32> to vector<8x128xf32>
    %105 = arith.select %26, %103, %104 : vector<8x128xi1>, vector<8x128xf32>
    %106 = arith.truncf %95 : vector<8x32xf32> to vector<8x32xbf16>
    %cst_25 = arith.constant dense<0.000000e+00> : vector<8x128xf32>
    %107 = tpu.matmul %106, %1, %cst_25 {dimension_numbers = #tpu.dot_dimension_numbers<[1], [0], [0], [1], [0, 0, 1, 1], [], []>} : vector<8x32xbf16>, vector<32x128xbf16>, vector<8x128xf32> -> vector<8x128xf32>
    %108 = arith.addf %105, %107 : vector<8x128xf32>
    %109 = vector.extract_strided_slice %108 {offsets = [0, 0], sizes = [8, 96], strides = [1, 1]} : vector<8x128xf32> to vector<8x96xf32>
    %110 = arith.negf %109 : vector<8x96xf32>
    %111 = math.exp %110 : vector<8x96xf32>
    %cst_26 = arith.constant 1.000000e+00 : f32
    %112 = vector.broadcast %cst_26 : f32 to vector<8x96xf32>
    %113 = arith.addf %112, %111 : vector<8x96xf32>
    %114 = arith.divf %112, %113 : vector<8x96xf32>
    %115 = vector.extract_strided_slice %114 {offsets = [0, 0], sizes = [8, 32], strides = [1, 1]} : vector<8x96xf32> to vector<8x32xf32>
    %116 = vector.extract_strided_slice %114 {offsets = [0, 32], sizes = [8, 32], strides = [1, 1]} : vector<8x96xf32> to vector<8x32xf32>
    %117 = vector.extract_strided_slice %114 {offsets = [0, 64], sizes = [8, 32], strides = [1, 1]} : vector<8x96xf32> to vector<8x32xf32>
    %118 = vector.extract_strided_slice %108 {offsets = [0, 96], sizes = [8, 32], strides = [1, 1]} : vector<8x128xf32> to vector<8x32xf32>
    %119 = math.tanh %118 : vector<8x32xf32>
    %120 = arith.mulf %116, %96 : vector<8x32xf32>
    %121 = arith.mulf %115, %119 : vector<8x32xf32>
    %122 = arith.addf %120, %121 : vector<8x32xf32>
    %123 = math.tanh %122 : vector<8x32xf32>
    %124 = arith.mulf %117, %123 : vector<8x32xf32>
    %125 = vector.extract_strided_slice %36 {offsets = [2, 0, 0], sizes = [1, 8, 32], strides = [1, 1, 1]} : vector<8x8x32xi1> to vector<1x8x32xi1>
    %126 = vector.shape_cast %125 : vector<1x8x32xi1> to vector<8x32xi1>
    %127 = arith.select %126, %124, %95 : vector<8x32xi1>, vector<8x32xf32>
    %128 = arith.select %126, %122, %96 : vector<8x32xi1>, vector<8x32xf32>
    %cst_27 = arith.constant 0.000000e+00 : f32
    %129 = vector.broadcast %cst_27 : f32 to vector<8x32xf32>
    %130 = arith.select %126, %124, %129 : vector<8x32xi1>, vector<8x32xf32>
    %131 = vector.extract_strided_slice %130 {offsets = [0, 0], sizes = [8, 16], strides = [1, 1]} : vector<8x32xf32> to vector<8x16xf32>
    %c16_28 = arith.constant 16 : index
    %c0_29 = arith.constant 0 : index
    %132 = vector.load %arg6[%c16_28, %c0_29] : memref<64x32xf32, #tpu.memory_space<vmem>>, vector<8x16xf32>
    tpu.vector_store %arg6[%c16_28, %c0_29], %131 {strides = array<i32>} : memref<64x32xf32, #tpu.memory_space<vmem>>, vector<8x16xf32>,
    %133 = vector.extract_strided_slice %130 {offsets = [0, 16], sizes = [8, 16], strides = [1, 1]} : vector<8x32xf32> to vector<8x16xf32>
    %c40 = arith.constant 40 : index
    %c16_30 = arith.constant 16 : index
    %134 = vector.load %arg6[%c40, %c16_30] : memref<64x32xf32, #tpu.memory_space<vmem>>, vector<8x16xf32>
    tpu.vector_store %arg6[%c40, %c16_30], %133 {strides = array<i32>} : memref<64x32xf32, #tpu.memory_space<vmem>>, vector<8x16xf32>,
    %135 = vector.extract_strided_slice %7 {offsets = [24, 0], sizes = [8, 128], strides = [1, 1]} : vector<64x128xf32> to vector<8x128xf32>
    %136 = vector.extract_strided_slice %7 {offsets = [32, 0], sizes = [8, 128], strides = [1, 1]} : vector<64x128xf32> to vector<8x128xf32>
    %137 = arith.select %26, %135, %136 : vector<8x128xi1>, vector<8x128xf32>
    %138 = arith.truncf %127 : vector<8x32xf32> to vector<8x32xbf16>
    %cst_31 = arith.constant dense<0.000000e+00> : vector<8x128xf32>
    %139 = tpu.matmul %138, %1, %cst_31 {dimension_numbers = #tpu.dot_dimension_numbers<[1], [0], [0], [1], [0, 0, 1, 1], [], []>} : vector<8x32xbf16>, vector<32x128xbf16>, vector<8x128xf32> -> vector<8x128xf32>
    %140 = arith.addf %137, %139 : vector<8x128xf32>
    %141 = vector.extract_strided_slice %140 {offsets = [0, 0], sizes = [8, 96], strides = [1, 1]} : vector<8x128xf32> to vector<8x96xf32>
    %142 = arith.negf %141 : vector<8x96xf32>
    %143 = math.exp %142 : vector<8x96xf32>
    %cst_32 = arith.constant 1.000000e+00 : f32
    %144 = vector.broadcast %cst_32 : f32 to vector<8x96xf32>
    %145 = arith.addf %144, %143 : vector<8x96xf32>
    %146 = arith.divf %144, %145 : vector<8x96xf32>
    %147 = vector.extract_strided_slice %146 {offsets = [0, 0], sizes = [8, 32], strides = [1, 1]} : vector<8x96xf32> to vector<8x32xf32>
    %148 = vector.extract_strided_slice %146 {offsets = [0, 32], sizes = [8, 32], strides = [1, 1]} : vector<8x96xf32> to vector<8x32xf32>
    %149 = vector.extract_strided_slice %146 {offsets = [0, 64], sizes = [8, 32], strides = [1, 1]} : vector<8x96xf32> to vector<8x32xf32>
    %150 = vector.extract_strided_slice %140 {offsets = [0, 96], sizes = [8, 32], strides = [1, 1]} : vector<8x128xf32> to vector<8x32xf32>
    %151 = math.tanh %150 : vector<8x32xf32>
    %152 = arith.mulf %148, %128 : vector<8x32xf32>
    %153 = arith.mulf %147, %151 : vector<8x32xf32>
    %154 = arith.addf %152, %153 : vector<8x32xf32>
    %155 = math.tanh %154 : vector<8x32xf32>
    %156 = arith.mulf %149, %155 : vector<8x32xf32>
    %157 = vector.extract_strided_slice %36 {offsets = [3, 0, 0], sizes = [1, 8, 32], strides = [1, 1, 1]} : vector<8x8x32xi1> to vector<1x8x32xi1>
    %158 = vector.shape_cast %157 : vector<1x8x32xi1> to vector<8x32xi1>
    %159 = arith.select %158, %156, %127 : vector<8x32xi1>, vector<8x32xf32>
    %160 = arith.select %158, %154, %128 : vector<8x32xi1>, vector<8x32xf32>
    %cst_33 = arith.constant 0.000000e+00 : f32
    %161 = vector.broadcast %cst_33 : f32 to vector<8x32xf32>
    %162 = arith.select %158, %156, %161 : vector<8x32xi1>, vector<8x32xf32>
    %163 = vector.extract_strided_slice %162 {offsets = [0, 0], sizes = [8, 16], strides = [1, 1]} : vector<8x32xf32> to vector<8x16xf32>
    %c24 = arith.constant 24 : index
    %c0_34 = arith.constant 0 : index
    %164 = vector.load %arg6[%c24, %c0_34] : memref<64x32xf32, #tpu.memory_space<vmem>>, vector<8x16xf32>
    tpu.vector_store %arg6[%c24, %c0_34], %163 {strides = array<i32>} : memref<64x32xf32, #tpu.memory_space<vmem>>, vector<8x16xf32>,
    %165 = vector.extract_strided_slice %162 {offsets = [0, 16], sizes = [8, 16], strides = [1, 1]} : vector<8x32xf32> to vector<8x16xf32>
    %c32 = arith.constant 32 : index
    %c16_35 = arith.constant 16 : index
    %166 = vector.load %arg6[%c32, %c16_35] : memref<64x32xf32, #tpu.memory_space<vmem>>, vector<8x16xf32>
    tpu.vector_store %arg6[%c32, %c16_35], %165 {strides = array<i32>} : memref<64x32xf32, #tpu.memory_space<vmem>>, vector<8x16xf32>,
    %167 = vector.extract_strided_slice %7 {offsets = [32, 0], sizes = [8, 128], strides = [1, 1]} : vector<64x128xf32> to vector<8x128xf32>
    %168 = vector.extract_strided_slice %7 {offsets = [24, 0], sizes = [8, 128], strides = [1, 1]} : vector<64x128xf32> to vector<8x128xf32>
    %169 = arith.select %26, %167, %168 : vector<8x128xi1>, vector<8x128xf32>
    %170 = arith.truncf %159 : vector<8x32xf32> to vector<8x32xbf16>
    %cst_36 = arith.constant dense<0.000000e+00> : vector<8x128xf32>
    %171 = tpu.matmul %170, %1, %cst_36 {dimension_numbers = #tpu.dot_dimension_numbers<[1], [0], [0], [1], [0, 0, 1, 1], [], []>} : vector<8x32xbf16>, vector<32x128xbf16>, vector<8x128xf32> -> vector<8x128xf32>
    %172 = arith.addf %169, %171 : vector<8x128xf32>
    %173 = vector.extract_strided_slice %172 {offsets = [0, 0], sizes = [8, 96], strides = [1, 1]} : vector<8x128xf32> to vector<8x96xf32>
    %174 = arith.negf %173 : vector<8x96xf32>
    %175 = math.exp %174 : vector<8x96xf32>
    %cst_37 = arith.constant 1.000000e+00 : f32
    %176 = vector.broadcast %cst_37 : f32 to vector<8x96xf32>
    %177 = arith.addf %176, %175 : vector<8x96xf32>
    %178 = arith.divf %176, %177 : vector<8x96xf32>
    %179 = vector.extract_strided_slice %178 {offsets = [0, 0], sizes = [8, 32], strides = [1, 1]} : vector<8x96xf32> to vector<8x32xf32>
    %180 = vector.extract_strided_slice %178 {offsets = [0, 32], sizes = [8, 32], strides = [1, 1]} : vector<8x96xf32> to vector<8x32xf32>
    %181 = vector.extract_strided_slice %178 {offsets = [0, 64], sizes = [8, 32], strides = [1, 1]} : vector<8x96xf32> to vector<8x32xf32>
    %182 = vector.extract_strided_slice %172 {offsets = [0, 96], sizes = [8, 32], strides = [1, 1]} : vector<8x128xf32> to vector<8x32xf32>
    %183 = math.tanh %182 : vector<8x32xf32>
    %184 = arith.mulf %180, %160 : vector<8x32xf32>
    %185 = arith.mulf %179, %183 : vector<8x32xf32>
    %186 = arith.addf %184, %185 : vector<8x32xf32>
    %187 = math.tanh %186 : vector<8x32xf32>
    %188 = arith.mulf %181, %187 : vector<8x32xf32>
    %189 = vector.extract_strided_slice %36 {offsets = [4, 0, 0], sizes = [1, 8, 32], strides = [1, 1, 1]} : vector<8x8x32xi1> to vector<1x8x32xi1>
    %190 = vector.shape_cast %189 : vector<1x8x32xi1> to vector<8x32xi1>
    %191 = arith.select %190, %188, %159 : vector<8x32xi1>, vector<8x32xf32>
    %192 = arith.select %190, %186, %160 : vector<8x32xi1>, vector<8x32xf32>
    %cst_38 = arith.constant 0.000000e+00 : f32
    %193 = vector.broadcast %cst_38 : f32 to vector<8x32xf32>
    %194 = arith.select %190, %188, %193 : vector<8x32xi1>, vector<8x32xf32>
    %195 = vector.extract_strided_slice %194 {offsets = [0, 0], sizes = [8, 16], strides = [1, 1]} : vector<8x32xf32> to vector<8x16xf32>
    %c32_39 = arith.constant 32 : index
    %c0_40 = arith.constant 0 : index
    %196 = vector.load %arg6[%c32_39, %c0_40] : memref<64x32xf32, #tpu.memory_space<vmem>>, vector<8x16xf32>
    tpu.vector_store %arg6[%c32_39, %c0_40], %195 {strides = array<i32>} : memref<64x32xf32, #tpu.memory_space<vmem>>, vector<8x16xf32>,
    %197 = vector.extract_strided_slice %194 {offsets = [0, 16], sizes = [8, 16], strides = [1, 1]} : vector<8x32xf32> to vector<8x16xf32>
    %c24_41 = arith.constant 24 : index
    %c16_42 = arith.constant 16 : index
    %198 = vector.load %arg6[%c24_41, %c16_42] : memref<64x32xf32, #tpu.memory_space<vmem>>, vector<8x16xf32>
    tpu.vector_store %arg6[%c24_41, %c16_42], %197 {strides = array<i32>} : memref<64x32xf32, #tpu.memory_space<vmem>>, vector<8x16xf32>,
    %199 = vector.extract_strided_slice %7 {offsets = [40, 0], sizes = [8, 128], strides = [1, 1]} : vector<64x128xf32> to vector<8x128xf32>
    %200 = vector.extract_strided_slice %7 {offsets = [16, 0], sizes = [8, 128], strides = [1, 1]} : vector<64x128xf32> to vector<8x128xf32>
    %201 = arith.select %26, %199, %200 : vector<8x128xi1>, vector<8x128xf32>
    %202 = arith.truncf %191 : vector<8x32xf32> to vector<8x32xbf16>
    %cst_43 = arith.constant dense<0.000000e+00> : vector<8x128xf32>
    %203 = tpu.matmul %202, %1, %cst_43 {dimension_numbers = #tpu.dot_dimension_numbers<[1], [0], [0], [1], [0, 0, 1, 1], [], []>} : vector<8x32xbf16>, vector<32x128xbf16>, vector<8x128xf32> -> vector<8x128xf32>
    %204 = arith.addf %201, %203 : vector<8x128xf32>
    %205 = vector.extract_strided_slice %204 {offsets = [0, 0], sizes = [8, 96], strides = [1, 1]} : vector<8x128xf32> to vector<8x96xf32>
    %206 = arith.negf %205 : vector<8x96xf32>
    %207 = math.exp %206 : vector<8x96xf32>
    %cst_44 = arith.constant 1.000000e+00 : f32
    %208 = vector.broadcast %cst_44 : f32 to vector<8x96xf32>
    %209 = arith.addf %208, %207 : vector<8x96xf32>
    %210 = arith.divf %208, %209 : vector<8x96xf32>
    %211 = vector.extract_strided_slice %210 {offsets = [0, 0], sizes = [8, 32], strides = [1, 1]} : vector<8x96xf32> to vector<8x32xf32>
    %212 = vector.extract_strided_slice %210 {offsets = [0, 32], sizes = [8, 32], strides = [1, 1]} : vector<8x96xf32> to vector<8x32xf32>
    %213 = vector.extract_strided_slice %210 {offsets = [0, 64], sizes = [8, 32], strides = [1, 1]} : vector<8x96xf32> to vector<8x32xf32>
    %214 = vector.extract_strided_slice %204 {offsets = [0, 96], sizes = [8, 32], strides = [1, 1]} : vector<8x128xf32> to vector<8x32xf32>
    %215 = math.tanh %214 : vector<8x32xf32>
    %216 = arith.mulf %212, %192 : vector<8x32xf32>
    %217 = arith.mulf %211, %215 : vector<8x32xf32>
    %218 = arith.addf %216, %217 : vector<8x32xf32>
    %219 = math.tanh %218 : vector<8x32xf32>
    %220 = arith.mulf %213, %219 : vector<8x32xf32>
    %221 = vector.extract_strided_slice %36 {offsets = [5, 0, 0], sizes = [1, 8, 32], strides = [1, 1, 1]} : vector<8x8x32xi1> to vector<1x8x32xi1>
    %222 = vector.shape_cast %221 : vector<1x8x32xi1> to vector<8x32xi1>
    %223 = arith.select %222, %220, %191 : vector<8x32xi1>, vector<8x32xf32>
    %224 = arith.select %222, %218, %192 : vector<8x32xi1>, vector<8x32xf32>
    %cst_45 = arith.constant 0.000000e+00 : f32
    %225 = vector.broadcast %cst_45 : f32 to vector<8x32xf32>
    %226 = arith.select %222, %220, %225 : vector<8x32xi1>, vector<8x32xf32>
    %227 = vector.extract_strided_slice %226 {offsets = [0, 0], sizes = [8, 16], strides = [1, 1]} : vector<8x32xf32> to vector<8x16xf32>
    %c40_46 = arith.constant 40 : index
    %c0_47 = arith.constant 0 : index
    %228 = vector.load %arg6[%c40_46, %c0_47] : memref<64x32xf32, #tpu.memory_space<vmem>>, vector<8x16xf32>
    tpu.vector_store %arg6[%c40_46, %c0_47], %227 {strides = array<i32>} : memref<64x32xf32, #tpu.memory_space<vmem>>, vector<8x16xf32>,
    %229 = vector.extract_strided_slice %226 {offsets = [0, 16], sizes = [8, 16], strides = [1, 1]} : vector<8x32xf32> to vector<8x16xf32>
    %c16_48 = arith.constant 16 : index
    %c16_49 = arith.constant 16 : index
    %230 = vector.load %arg6[%c16_48, %c16_49] : memref<64x32xf32, #tpu.memory_space<vmem>>, vector<8x16xf32>
    tpu.vector_store %arg6[%c16_48, %c16_49], %229 {strides = array<i32>} : memref<64x32xf32, #tpu.memory_space<vmem>>, vector<8x16xf32>,
    %231 = vector.extract_strided_slice %7 {offsets = [48, 0], sizes = [8, 128], strides = [1, 1]} : vector<64x128xf32> to vector<8x128xf32>
    %232 = vector.extract_strided_slice %7 {offsets = [8, 0], sizes = [8, 128], strides = [1, 1]} : vector<64x128xf32> to vector<8x128xf32>
    %233 = arith.select %26, %231, %232 : vector<8x128xi1>, vector<8x128xf32>
    %234 = arith.truncf %223 : vector<8x32xf32> to vector<8x32xbf16>
    %cst_50 = arith.constant dense<0.000000e+00> : vector<8x128xf32>
    %235 = tpu.matmul %234, %1, %cst_50 {dimension_numbers = #tpu.dot_dimension_numbers<[1], [0], [0], [1], [0, 0, 1, 1], [], []>} : vector<8x32xbf16>, vector<32x128xbf16>, vector<8x128xf32> -> vector<8x128xf32>
    %236 = arith.addf %233, %235 : vector<8x128xf32>
    %237 = vector.extract_strided_slice %236 {offsets = [0, 0], sizes = [8, 96], strides = [1, 1]} : vector<8x128xf32> to vector<8x96xf32>
    %238 = arith.negf %237 : vector<8x96xf32>
    %239 = math.exp %238 : vector<8x96xf32>
    %cst_51 = arith.constant 1.000000e+00 : f32
    %240 = vector.broadcast %cst_51 : f32 to vector<8x96xf32>
    %241 = arith.addf %240, %239 : vector<8x96xf32>
    %242 = arith.divf %240, %241 : vector<8x96xf32>
    %243 = vector.extract_strided_slice %242 {offsets = [0, 0], sizes = [8, 32], strides = [1, 1]} : vector<8x96xf32> to vector<8x32xf32>
    %244 = vector.extract_strided_slice %242 {offsets = [0, 32], sizes = [8, 32], strides = [1, 1]} : vector<8x96xf32> to vector<8x32xf32>
    %245 = vector.extract_strided_slice %242 {offsets = [0, 64], sizes = [8, 32], strides = [1, 1]} : vector<8x96xf32> to vector<8x32xf32>
    %246 = vector.extract_strided_slice %236 {offsets = [0, 96], sizes = [8, 32], strides = [1, 1]} : vector<8x128xf32> to vector<8x32xf32>
    %247 = math.tanh %246 : vector<8x32xf32>
    %248 = arith.mulf %244, %224 : vector<8x32xf32>
    %249 = arith.mulf %243, %247 : vector<8x32xf32>
    %250 = arith.addf %248, %249 : vector<8x32xf32>
    %251 = math.tanh %250 : vector<8x32xf32>
    %252 = arith.mulf %245, %251 : vector<8x32xf32>
    %253 = vector.extract_strided_slice %36 {offsets = [6, 0, 0], sizes = [1, 8, 32], strides = [1, 1, 1]} : vector<8x8x32xi1> to vector<1x8x32xi1>
    %254 = vector.shape_cast %253 : vector<1x8x32xi1> to vector<8x32xi1>
    %255 = arith.select %254, %252, %223 : vector<8x32xi1>, vector<8x32xf32>
    %256 = arith.select %254, %250, %224 : vector<8x32xi1>, vector<8x32xf32>
    %cst_52 = arith.constant 0.000000e+00 : f32
    %257 = vector.broadcast %cst_52 : f32 to vector<8x32xf32>
    %258 = arith.select %254, %252, %257 : vector<8x32xi1>, vector<8x32xf32>
    %259 = vector.extract_strided_slice %258 {offsets = [0, 0], sizes = [8, 16], strides = [1, 1]} : vector<8x32xf32> to vector<8x16xf32>
    %c48_53 = arith.constant 48 : index
    %c0_54 = arith.constant 0 : index
    %260 = vector.load %arg6[%c48_53, %c0_54] : memref<64x32xf32, #tpu.memory_space<vmem>>, vector<8x16xf32>
    tpu.vector_store %arg6[%c48_53, %c0_54], %259 {strides = array<i32>} : memref<64x32xf32, #tpu.memory_space<vmem>>, vector<8x16xf32>,
    %261 = vector.extract_strided_slice %258 {offsets = [0, 16], sizes = [8, 16], strides = [1, 1]} : vector<8x32xf32> to vector<8x16xf32>
    %c8_55 = arith.constant 8 : index
    %c16_56 = arith.constant 16 : index
    %262 = vector.load %arg6[%c8_55, %c16_56] : memref<64x32xf32, #tpu.memory_space<vmem>>, vector<8x16xf32>
    tpu.vector_store %arg6[%c8_55, %c16_56], %261 {strides = array<i32>} : memref<64x32xf32, #tpu.memory_space<vmem>>, vector<8x16xf32>,
    %263 = vector.extract_strided_slice %7 {offsets = [56, 0], sizes = [8, 128], strides = [1, 1]} : vector<64x128xf32> to vector<8x128xf32>
    %264 = vector.extract_strided_slice %7 {offsets = [0, 0], sizes = [8, 128], strides = [1, 1]} : vector<64x128xf32> to vector<8x128xf32>
    %265 = arith.select %26, %263, %264 : vector<8x128xi1>, vector<8x128xf32>
    %266 = arith.truncf %255 : vector<8x32xf32> to vector<8x32xbf16>
    %cst_57 = arith.constant dense<0.000000e+00> : vector<8x128xf32>
    %267 = tpu.matmul %266, %1, %cst_57 {dimension_numbers = #tpu.dot_dimension_numbers<[1], [0], [0], [1], [0, 0, 1, 1], [], []>} : vector<8x32xbf16>, vector<32x128xbf16>, vector<8x128xf32> -> vector<8x128xf32>
    %268 = arith.addf %265, %267 : vector<8x128xf32>
    %269 = vector.extract_strided_slice %268 {offsets = [0, 0], sizes = [8, 96], strides = [1, 1]} : vector<8x128xf32> to vector<8x96xf32>
    %270 = arith.negf %269 : vector<8x96xf32>
    %271 = math.exp %270 : vector<8x96xf32>
    %cst_58 = arith.constant 1.000000e+00 : f32
    %272 = vector.broadcast %cst_58 : f32 to vector<8x96xf32>
    %273 = arith.addf %272, %271 : vector<8x96xf32>
    %274 = arith.divf %272, %273 : vector<8x96xf32>
    %275 = vector.extract_strided_slice %274 {offsets = [0, 0], sizes = [8, 32], strides = [1, 1]} : vector<8x96xf32> to vector<8x32xf32>
    %276 = vector.extract_strided_slice %274 {offsets = [0, 32], sizes = [8, 32], strides = [1, 1]} : vector<8x96xf32> to vector<8x32xf32>
    %277 = vector.extract_strided_slice %274 {offsets = [0, 64], sizes = [8, 32], strides = [1, 1]} : vector<8x96xf32> to vector<8x32xf32>
    %278 = vector.extract_strided_slice %268 {offsets = [0, 96], sizes = [8, 32], strides = [1, 1]} : vector<8x128xf32> to vector<8x32xf32>
    %279 = math.tanh %278 : vector<8x32xf32>
    %280 = arith.mulf %276, %256 : vector<8x32xf32>
    %281 = arith.mulf %275, %279 : vector<8x32xf32>
    %282 = arith.addf %280, %281 : vector<8x32xf32>
    %283 = math.tanh %282 : vector<8x32xf32>
    %284 = arith.mulf %277, %283 : vector<8x32xf32>
    %285 = vector.extract_strided_slice %36 {offsets = [7, 0, 0], sizes = [1, 8, 32], strides = [1, 1, 1]} : vector<8x8x32xi1> to vector<1x8x32xi1>
    %286 = vector.shape_cast %285 : vector<1x8x32xi1> to vector<8x32xi1>
    %287 = arith.select %286, %284, %255 : vector<8x32xi1>, vector<8x32xf32>
    %cst_59 = arith.constant 0.000000e+00 : f32
    %288 = vector.broadcast %cst_59 : f32 to vector<8x32xf32>
    %289 = arith.select %286, %284, %288 : vector<8x32xi1>, vector<8x32xf32>
    %290 = vector.extract_strided_slice %289 {offsets = [0, 0], sizes = [8, 16], strides = [1, 1]} : vector<8x32xf32> to vector<8x16xf32>
    %c56_60 = arith.constant 56 : index
    %c0_61 = arith.constant 0 : index
    %291 = vector.load %arg6[%c56_60, %c0_61] : memref<64x32xf32, #tpu.memory_space<vmem>>, vector<8x16xf32>
    tpu.vector_store %arg6[%c56_60, %c0_61], %290 {strides = array<i32>} : memref<64x32xf32, #tpu.memory_space<vmem>>, vector<8x16xf32>,
    %292 = vector.extract_strided_slice %289 {offsets = [0, 16], sizes = [8, 16], strides = [1, 1]} : vector<8x32xf32> to vector<8x16xf32>
    %c0_62 = arith.constant 0 : index
    %c16_63 = arith.constant 16 : index
    %293 = vector.load %arg6[%c0_62, %c16_63] : memref<64x32xf32, #tpu.memory_space<vmem>>, vector<8x16xf32>
    tpu.vector_store %arg6[%c0_62, %c16_63], %292 {strides = array<i32>} : memref<64x32xf32, #tpu.memory_space<vmem>>, vector<8x16xf32>,
    %c0_64 = arith.constant 0 : index
    %c0_65 = arith.constant 0 : index
    %294 = vector.load %arg7[%c0_64, %c0_65] : memref<8x32xf32, #tpu.memory_space<vmem>>, vector<8x32xf32>
    tpu.vector_store %arg7[%c0_64, %c0_65], %287 {strides = array<i32>} : memref<8x32xf32, #tpu.memory_space<vmem>>, vector<8x32xf32>,
    return
  }
  func.func @transform_0(%arg0: i32) -> (i32, i32) {
    %c0_i32 = arith.constant 0 : i32
    %c0_i32_0 = arith.constant 0 : i32
    %c0_i32_1 = arith.constant 0 : i32
    return %c0_i32, %c0_i32_0 : i32, i32
  }
  func.func @transform_1(%arg0: i32) -> (i32, i32) {
    %c0_i32 = arith.constant 0 : i32
    %c0_i32_0 = arith.constant 0 : i32
    %c0_i32_1 = arith.constant 0 : i32
    return %c0_i32, %c0_i32_0 : i32, i32
  }
  func.func @transform_2(%arg0: i32) -> (i32, i32) {
    %c0_i32 = arith.constant 0 : i32
    %c0_i32_0 = arith.constant 0 : i32
    %c0_i32_1 = arith.constant 0 : i32
    return %c0_i32, %c0_i32_0 : i32, i32
  }
  func.func @transform_3(%arg0: i32) -> (i32, i32) {
    %c0_i32 = arith.constant 0 : i32
    %c0_i32_0 = arith.constant 0 : i32
    %c0_i32_1 = arith.constant 0 : i32
    return %c0_i32, %c0_i32_0 : i32, i32
  }
  func.func @transform_4(%arg0: i32) -> (i32, i32) {
    %c0_i32 = arith.constant 0 : i32
    %c0_i32_0 = arith.constant 0 : i32
    %c0_i32_1 = arith.constant 0 : i32
    return %c0_i32, %c0_i32_0 : i32, i32
  }
  func.func @transform_5(%arg0: i32) -> (i32, i32) {
    %c0_i32 = arith.constant 0 : i32
    %c0_i32_0 = arith.constant 0 : i32
    %c0_i32_1 = arith.constant 0 : i32
    return %c0_i32, %c0_i32_0 : i32, i32
  }
  func.func @transform_6(%arg0: i32) -> (i32, i32) {
    %c0_i32 = arith.constant 0 : i32
    %c0_i32_0 = arith.constant 0 : i32
    %c0_i32_1 = arith.constant 0 : i32
    return %c0_i32, %c0_i32_0 : i32, i32
  }
}

</mosaic_0001>

<llo_original>
// kernel: rnn_encoder_forward.1
$region0: #{rnn_encoder_forward.1}
  #allocation0 [shape = 'u32[]', space=smem, size = 0x4, offset = 0x4, fixed_abs, tag = 'smem constant byte address 0x4 - core index']
  #allocation1 [shape = 'u32[144,128]{1,0:T(1,128)}', space=vmem, size = 0x12000, scoped, tag = 'internal scratch']
  %s0 = inlined_call_operand.vmem [shape: s32[8,1], index: 0, kind: input, shape index: {}]
  %s1 = inlined_call_operand.vmem [shape: bf16[64,64], index: 1, kind: input, shape index: {}]
  %s2 = inlined_call_operand.vmem [shape: bf16[64,128], index: 2, kind: input, shape index: {}]
  %s3 = inlined_call_operand.vmem [shape: bf16[32,128], index: 3, kind: input, shape index: {}]
  %s4 = inlined_call_operand.vmem [shape: f32[1,128], index: 4, kind: input, shape index: {}]
  %s5 = inlined_call_operand.vmem [shape: f32[64,32], index: 5, kind: output, shape index: {0}]
  %s6 = inlined_call_operand.vmem [shape: f32[8,32], index: 6, kind: output, shape index: {1}]
  %7 = xla_tuple %s5, %s6
  %s8 = sld [smem:[#allocation0]]
  $region38: #{rnn_encoder_forward.1} parent=0
    _
  %s10 = ssub.s32 1, %s8
  %s11 = scalar_select 0, %s10, %s8
  // Predicated region
  $region2: #{rnn_encoder_forward.1} parent=0 // pred_check
    _
  $region3: #{rnn_encoder_forward.1} parent=0 // pred_check_branch
    %13 = sbr.rel (0) target = $region5
  $region4: #{rnn_encoder_forward.1} parent=0 // pred_region
    _
  $region5: #{rnn_encoder_forward.1} parent=0 // pred_fallthru
    _
  // Predicated region
  $region6: #{rnn_encoder_forward.1} parent=0 // pred_check
    _
  $region7: #{rnn_encoder_forward.1} parent=0 // pred_check_branch
    %15 = sbr.rel (0) target = $region9
  $region8: #{rnn_encoder_forward.1} parent=0 // pred_region
    _
  $region9: #{rnn_encoder_forward.1} parent=0 // pred_fallthru
    _
  // Predicated region
  $region10: #{rnn_encoder_forward.1} parent=0 // pred_check
    _
  $region11: #{rnn_encoder_forward.1} parent=0 // pred_check_branch
    %17 = sbr.rel (0) target = $region13
  $region12: #{rnn_encoder_forward.1} parent=0 // pred_region
    _
  $region13: #{rnn_encoder_forward.1} parent=0 // pred_fallthru
    _
  // Predicated region
  $region14: #{rnn_encoder_forward.1} parent=0 // pred_check
    _
  $region15: #{rnn_encoder_forward.1} parent=0 // pred_check_branch
    %19 = sbr.rel (0) target = $region17
  $region16: #{rnn_encoder_forward.1} parent=0 // pred_region
    _
  $region17: #{rnn_encoder_forward.1} parent=0 // pred_fallthru
    _
  // Predicated region
  $region18: #{rnn_encoder_forward.1} parent=0 // pred_check
    _
  $region19: #{rnn_encoder_forward.1} parent=0 // pred_check_branch
    %21 = sbr.rel (0) target = $region21
  $region20: #{rnn_encoder_forward.1} parent=0 // pred_region
    _
  $region21: #{rnn_encoder_forward.1} parent=0 // pred_fallthru
    _
  %v23 = vld [vmem:[%s0] sm:$0xff]
  %v24 = vld [vmem:[%s3] sm:$0xf]
  %v25 = vld [vmem:[%s3 + $0x4] sm:$0xf]
  %v26 = vld [vmem:[%s3 + $0x8] sm:$0xf]
  %v27 = vld [vmem:[%s3 + $0xc] sm:$0xf]
  %v28 = vld [vmem:[%s1] sm:$0xf]
  %v29 = vld [vmem:[%s1 + $0x4] sm:$0xf]
  %v30 = vld [vmem:[%s1 + $0x8] sm:$0xf]
  %v31 = vld [vmem:[%s1 + $0xc] sm:$0xf]
  %v32 = vld [vmem:[%s1 + $0x10] sm:$0xf]
  %v33 = vld [vmem:[%s1 + $0x14] sm:$0xf]
  %v34 = vld [vmem:[%s1 + $0x18] sm:$0xf]
  %v35 = vld [vmem:[%s1 + $0x1c] sm:$0xf]
  %v36 = vld [vmem:[%s2] sm:$0xf]
  %v37 = vld [vmem:[%s2 + $0x4] sm:$0xf]
  %v38 = vld [vmem:[%s2 + $0x8] sm:$0xf]
  %v39 = vld [vmem:[%s2 + $0xc] sm:$0xf]
  %v40 = vld [vmem:[%s2 + $0x10] sm:$0xf]
  %v41 = vld [vmem:[%s2 + $0x14] sm:$0xf]
  %v42 = vld [vmem:[%s2 + $0x18] sm:$0xf]
  %v43 = vld [vmem:[%s2 + $0x1c] sm:$0xf]
  %v44 = vld [vmem:[%s4] sm:$0x1]
  %v46 = vlaneseq
  %v47 = vshrl.u32 %v46, 7
  %v48 = vsub.s32 0, %v47
  %v49 = vrot.slane %v44, %v48
  %v59 = vunpack.c.l.b16 %v28
  %v60 = vunpack.c.l.b16 %v29
  %v61 = vunpack.c.l.b16 %v30
  %v62 = vunpack.c.l.b16 %v31
  %v63 = vunpack.c.l.b16 %v32
  %v64 = vunpack.c.l.b16 %v33
  %v65 = vunpack.c.l.b16 %v34
  %v66 = vunpack.c.l.b16 %v35
  %v67 = vpack.c.b16 %v60, %v59
  %v68 = vpack.c.b16 %v62, %v61
  %v69 = vpack.c.b16 %v64, %v63
  %v70 = vpack.c.b16 %v66, %v65
  %v79 = vunpack.c.l.b16 %v36
  %v80 = vunpack.c.l.b16 %v37
  %v81 = vunpack.c.l.b16 %v38
  %v82 = vunpack.c.l.b16 %v39
  %v83 = vunpack.c.l.b16 %v40
  %v84 = vunpack.c.l.b16 %v41
  %v85 = vunpack.c.l.b16 %v42
  %v86 = vunpack.c.l.b16 %v43
  %v87 = vpack.c.b16 %v80, %v79
  %v88 = vpack.c.b16 %v82, %v81
  %v89 = vpack.c.b16 %v84, %v83
  %v90 = vpack.c.b16 %v86, %v85
  %vm95 = vcmask 523264
  %v97 = vsel %vm95, %v67, 0
  %v100 = vsel %vm95, %v68, 0
  %v103 = vsel %vm95, %v69, 0
  %v106 = vsel %vm95, %v70, 0
  %108 = vmatprep.subr.bf16.mxu0 0
  %109 = vmatpush1.bf16.msra.mxu0 %v87
  %110 = vmatprep.subr.bf16.mxu0 0
  %111 = vmatpush1.bf16.msra.mxu0 %v88
  %112 = vmatprep.subr.bf16.mxu0 0
  %113 = vmatpush1.bf16.msra.mxu0 %v89
  %114 = vmatprep.subr.bf16.mxu0 0
  %115 = vmatpush1.bf16.msra.mxu0 %v90
  %116 = vmatprep.subr.bf16.mxu0 0
  %117 = vmatpush1.bf16.msra.mxu0 0
  %118 = vmatprep.subr.bf16.mxu0 0
  %119 = vmatpush1.bf16.msra.mxu0 0
  %120 = vmatprep.subr.bf16.mxu0 0
  %121 = vmatpush1.bf16.msra.mxu0 0
  %122 = vmatprep.subr.bf16.mxu0 0
  %123 = vmatpush1.bf16.msra.mxu0 0
  %124 = vmatprep.subr.bf16.mxu0 0
  %125 = vmatpush1.bf16.msra.mxu0 0
  %126 = vmatprep.subr.bf16.mxu0 0
  %127 = vmatpush1.bf16.msra.mxu0 0
  %128 = vmatprep.subr.bf16.mxu0 0
  %129 = vmatpush1.bf16.msra.mxu0 0
  %130 = vmatprep.subr.bf16.mxu0 0
  %131 = vmatpush1.bf16.msra.mxu0 0
  %132 = vmatprep.subr.bf16.mxu0 0
  %133 = vmatpush1.bf16.msra.mxu0 0
  %134 = vmatprep.subr.bf16.mxu0 0
  %135 = vmatpush1.bf16.msra.mxu0 0
  %136 = vmatprep.subr.bf16.mxu0 0
  %137 = vmatpush1.bf16.msra.mxu0 0
  %138 = vmatprep.subr.bf16.mxu0 0
  %139 = vmatpush1.bf16.msra.mxu0 0
  %140 = vmatprep.mubr.bf16.mxu0 0
  %141 = vmatmul.mubr.bf16.gmra.mrb[0].mxu0 %v97
  %v142 = vpop.f32.mrb[0].mxu0
  %v143 = vadd.f32 %v49, %v142
  %v144 = vpop.f32.mrb[0].mxu0
  %v145 = vpop.f32.mrb[0].mxu0
  %v146 = vadd.f32 %v49, %v145
  %v147 = vpop.f32.mrb[0].mxu0
  %148 = vmatprep.mubr.bf16.mxu0 0
  %149 = vmatmul.mubr.bf16.gmra.mrb[0].mxu0 %v100
  %v150 = vpop.f32.mrb[0].mxu0
  %v151 = vadd.f32 %v49, %v150
  %v152 = vpop.f32.mrb[0].mxu0
  %v153 = vpop.f32.mrb[0].mxu0
  %v154 = vadd.f32 %v49, %v153
  %v155 = vpop.f32.mrb[0].mxu0
  %156 = vmatprep.mubr.bf16.mxu0 0
  %157 = vmatmul.mubr.bf16.gmra.mrb[0].mxu0 %v103
  %v158 = vpop.f32.mrb[0].mxu0
  %v159 = vadd.f32 %v49, %v158
  %v160 = vpop.f32.mrb[0].mxu0
  %v161 = vpop.f32.mrb[0].mxu0
  %v162 = vadd.f32 %v49, %v161
  %v163 = vpop.f32.mrb[0].mxu0
  %164 = vmatprep.mubr.bf16.mxu0 0
  %165 = vmatmul.mubr.bf16.gmra.mrb[0].mxu0 %v106
  %v166 = vpop.f32.mrb[0].mxu0
  %v167 = vadd.f32 %v49, %v166
  %v168 = vpop.f32.mrb[0].mxu0
  %v169 = vpop.f32.mrb[0].mxu0
  %v170 = vadd.f32 %v49, %v169
  %v171 = vpop.f32.mrb[0].mxu0
  %172 = vdwg.mxu0
  %v173 = vlaneseq
  %v174 = vand.u32 %v173, 127
  %vm175 = vcmp.lt.s32.totalorder %v174, 0
  %v176 = vsub.s32 0, %v174
  %v177 = vsel %vm175, %v176, %v174
  %v178 = vshrl.u32 %v177, 5
  %v179 = vand.u32 %v177, 31
  %v180 = vsub.s32 0, %v179
  %v181 = vsel %vm175, %v180, %v179
  %vm182 = vcmp.ne.s32.totalorder %v181, 0
  %vm183 = vcmp.lt.s32.totalorder %v181, 0
  %vm184 = vmand %vm183, %vm182
  %v185 = vadd.s32 %v181, 32
  %v186 = vsel %vm184, %v185, %v181
  %vm187 = vcmp.lt.s32.totalorder %v186, 16
  %vm188 = vcmp.lt.s32.totalorder %v174, 16
  %v189 = vsel %vm188, 0, 7
  %v190 = vsel %vm188, 1, 6
  %v191 = vsel %vm188, 2, 5
  %v192 = vsel %vm188, 3, 4
  %v193 = vsel %vm188, 4, 3
  %v194 = vsel %vm188, 5, 2
  %v195 = vsel %vm188, 6, 1
  %v196 = vsel %vm188, 7, 0
  %197 = vset.pattern.permute.xlu0 0
  %198 = vperm.xlu0 %197, %v23
  %v199 = vpop.permute.xlu0 %198
  %vm200 = vcmp.lt.s32.totalorder %v189, %v199
  %vm201 = vcmp.lt.s32.totalorder %v190, %v199
  %vm202 = vcmp.lt.s32.totalorder %v191, %v199
  %vm203 = vcmp.lt.s32.totalorder %v192, %v199
  %vm204 = vcmp.lt.s32.totalorder %v193, %v199
  %vm205 = vcmp.lt.s32.totalorder %v194, %v199
  %vm206 = vcmp.lt.s32.totalorder %v195, %v199
  %vm207 = vcmp.lt.s32.totalorder %v196, %v199
  %v208 = vsel %vm187, %v143, %v170
  %v213 = vunpack.c.l.b16 %v24
  %v214 = vunpack.c.l.b16 %v25
  %v215 = vunpack.c.l.b16 %v26
  %v216 = vunpack.c.l.b16 %v27
  %v217 = vpack.c.b16 %v214, %v213
  %v218 = vpack.c.b16 %v216, %v215
  %vm221 = vcmask 261120
  %v223 = vsel %vm221, 0, 0
  %225 = vmatprep.subr.bf16.mxu0 0
  %226 = vmatpush1.bf16.msra.mxu0 %v217
  %227 = vmatprep.subr.bf16.mxu0 0
  %228 = vmatpush1.bf16.msra.mxu0 %v218
  %229 = vmatprep.subr.bf16.mxu0 0
  %230 = vmatpush1.bf16.msra.mxu0 0
  %231 = vmatprep.subr.bf16.mxu0 0
  %232 = vmatpush1.bf16.msra.mxu0 0
  %233 = vmatprep.subr.bf16.mxu0 0
  %234 = vmatpush1.bf16.msra.mxu0 0
  %235 = vmatprep.subr.bf16.mxu0 0
  %236 = vmatpush1.bf16.msra.mxu0 0
  %237 = vmatprep.subr.bf16.mxu0 0
  %238 = vmatpush1.bf16.msra.mxu0 0
  %239 = vmatprep.subr.bf16.mxu0 0
  %240 = vmatpush1.bf16.msra.mxu0 0
  %241 = vmatprep.subr.bf16.mxu0 0
  %242 = vmatpush1.bf16.msra.mxu0 0
  %243 = vmatprep.subr.bf16.mxu0 0
  %244 = vmatpush1.bf16.msra.mxu0 0
  %245 = vmatprep.subr.bf16.mxu0 0
  %246 = vmatpush1.bf16.msra.mxu0 0
  %247 = vmatprep.subr.bf16.mxu0 0
  %248 = vmatpush1.bf16.msra.mxu0 0
  %249 = vmatprep.subr.bf16.mxu0 0
  %250 = vmatpush1.bf16.msra.mxu0 0
  %251 = vmatprep.subr.bf16.mxu0 0
  %252 = vmatpush1.bf16.msra.mxu0 0
  %253 = vmatprep.subr.bf16.mxu0 0
  %254 = vmatpush1.bf16.msra.mxu0 0
  %255 = vmatprep.subr.bf16.mxu0 0
  %256 = vmatpush1.bf16.msra.mxu0 0
  %257 = vmatprep.mubr.bf16.mxu0 0
  %258 = vmatmul.mubr.bf16.gmra.mrb[0].mxu0 %v223
  %v259 = vpop.f32.mrb[0].mxu0
  %v260 = vadd.f32 0.0, %v259
  %v261 = vpop.f32.mrb[0].mxu0
  %v262 = vpop.f32.mrb[0].mxu0
  %v263 = vpop.f32.mrb[0].mxu0
  %264 = vdwg.mxu0
  %v265 = vadd.f32 %v208, %v260
  %v266 = vxor.u32 %v265, 2147483648
  %v267 = vmul.f32 %v266, 1.442695
  %v268 = vpow.pop %v267
  %v269 = vadd.f32 %v268, 1.0
  %v270 = vrcp.pop %v269
  %v271 = vmul.f32 1.0, %v270
  %v272 = vtanh.pop %v265
  %v273 = vmul.f32 %v271, 0.0
  %275 = vrot.lane.b32.xlu0 %v272, 32
  %v276 = vpop.permute.xlu0 %275
  %v278 = vmul.f32 %v271, %v276
  %280 = vrot.lane.b32.xlu0 %v278, 32
  %v281 = vpop.permute.xlu0 %280
  %v283 = vadd.f32 %v273, %v281
  %v284 = vtanh.pop %v283
  %286 = vrot.lane.b32.xlu0 %v284, 32
  %v287 = vpop.permute.xlu0 %286
  %v289 = vmul.f32 %v271, %v287
  %291 = vrot.lane.b32.xlu0 %v289, 64
  %v292 = vpop.permute.xlu0 %291
  %v294 = vsel %vm200, %v292, 0.0
  %296 = vrot.lane.b32.xlu0 %v283, 96
  %v297 = vpop.permute.xlu0 %296
  %v299 = vsel %vm200, %v297, 0.0
  %vm300 = vcmask 130048
  %301 = vst.msk [vmem:[%s5] sm:$0xff] %vm300, %v294
  %vm302 = vcmask 261248
  %303 = vst.msk [vmem:[%s5 + $0x38] sm:$0xff] %vm302, %v294
  %v304 = vsel %vm187, %v146, %v167
  %v305 = vpack.c.bf16 %v294, %v294
  %v307 = vsel %vm221, %v305, 0
  %309 = vmatprep.subr.bf16.mxu0 0
  %310 = vmatpush1.bf16.msra.mxu0 %v217
  %311 = vmatprep.subr.bf16.mxu0 0
  %312 = vmatpush1.bf16.msra.mxu0 %v218
  %313 = vmatprep.subr.bf16.mxu0 0
  %314 = vmatpush1.bf16.msra.mxu0 0
  %315 = vmatprep.subr.bf16.mxu0 0
  %316 = vmatpush1.bf16.msra.mxu0 0
  %317 = vmatprep.subr.bf16.mxu0 0
  %318 = vmatpush1.bf16.msra.mxu0 0
  %319 = vmatprep.subr.bf16.mxu0 0
  %320 = vmatpush1.bf16.msra.mxu0 0
  %321 = vmatprep.subr.bf16.mxu0 0
  %322 = vmatpush1.bf16.msra.mxu0 0
  %323 = vmatprep.subr.bf16.mxu0 0
  %324 = vmatpush1.bf16.msra.mxu0 0
  %325 = vmatprep.subr.bf16.mxu0 0
  %326 = vmatpush1.bf16.msra.mxu0 0
  %327 = vmatprep.subr.bf16.mxu0 0
  %328 = vmatpush1.bf16.msra.mxu0 0
  %329 = vmatprep.subr.bf16.mxu0 0
  %330 = vmatpush1.bf16.msra.mxu0 0
  %331 = vmatprep.subr.bf16.mxu0 0
  %332 = vmatpush1.bf16.msra.mxu0 0
  %333 = vmatprep.subr.bf16.mxu0 0
  %334 = vmatpush1.bf16.msra.mxu0 0
  %335 = vmatprep.subr.bf16.mxu0 0
  %336 = vmatpush1.bf16.msra.mxu0 0
  %337 = vmatprep.subr.bf16.mxu0 0
  %338 = vmatpush1.bf16.msra.mxu0 0
  %339 = vmatprep.subr.bf16.mxu0 0
  %340 = vmatpush1.bf16.msra.mxu0 0
  %341 = vmatprep.mubr.bf16.mxu0 0
  %342 = vmatmul.mubr.bf16.gmra.mrb[0].mxu0 %v307
  %v343 = vpop.f32.mrb[0].mxu0
  %v344 = vadd.f32 0.0, %v343
  %v345 = vpop.f32.mrb[0].mxu0
  %v346 = vpop.f32.mrb[0].mxu0
  %v347 = vpop.f32.mrb[0].mxu0
  %348 = vdwg.mxu0
  %v349 = vadd.f32 %v304, %v344
  %v350 = vxor.u32 %v349, 2147483648
  %v351 = vmul.f32 %v350, 1.442695
  %v352 = vpow.pop %v351
  %v353 = vadd.f32 %v352, 1.0
  %v354 = vrcp.pop %v353
  %v355 = vmul.f32 1.0, %v354
  %v356 = vtanh.pop %v349
  %358 = vrot.lane.b32.xlu0 %v299, 32
  %v359 = vpop.permute.xlu0 %358
  %v361 = vmul.f32 %v355, %v359
  %363 = vrot.lane.b32.xlu0 %v356, 32
  %v364 = vpop.permute.xlu0 %363
  %v366 = vmul.f32 %v355, %v364
  %368 = vrot.lane.b32.xlu0 %v366, 32
  %v369 = vpop.permute.xlu0 %368
  %v371 = vadd.f32 %v361, %v369
  %v372 = vtanh.pop %v371
  %374 = vrot.lane.b32.xlu0 %v372, 32
  %v375 = vpop.permute.xlu0 %374
  %v377 = vmul.f32 %v355, %v375
  %379 = vrot.lane.b32.xlu0 %v377, 64
  %v380 = vpop.permute.xlu0 %379
  %v382 = vsel %vm201, %v380, %v294
  %384 = vrot.lane.b32.xlu0 %v371, 96
  %v385 = vpop.permute.xlu0 %384
  %v387 = vsel %vm201, %v385, %v299
  %v388 = vsel %vm201, %v380, 0.0
  %389 = vst.msk [vmem:[%s5 + $0x8] sm:$0xff] %vm300, %v388
  %390 = vst.msk [vmem:[%s5 + $0x30] sm:$0xff] %vm302, %v388
  %v391 = vsel %vm187, %v151, %v162
  %v392 = vpack.c.bf16 %v382, %v382
  %v394 = vsel %vm221, %v392, 0
  %396 = vmatprep.subr.bf16.mxu0 0
  %397 = vmatpush1.bf16.msra.mxu0 %v217
  %398 = vmatprep.subr.bf16.mxu0 0
  %399 = vmatpush1.bf16.msra.mxu0 %v218
  %400 = vmatprep.subr.bf16.mxu0 0
  %401 = vmatpush1.bf16.msra.mxu0 0
  %402 = vmatprep.subr.bf16.mxu0 0
  %403 = vmatpush1.bf16.msra.mxu0 0
  %404 = vmatprep.subr.bf16.mxu0 0
  %405 = vmatpush1.bf16.msra.mxu0 0
  %406 = vmatprep.subr.bf16.mxu0 0
  %407 = vmatpush1.bf16.msra.mxu0 0
  %408 = vmatprep.subr.bf16.mxu0 0
  %409 = vmatpush1.bf16.msra.mxu0 0
  %410 = vmatprep.subr.bf16.mxu0 0
  %411 = vmatpush1.bf16.msra.mxu0 0
  %412 = vmatprep.subr.bf16.mxu0 0
  %413 = vmatpush1.bf16.msra.mxu0 0
  %414 = vmatprep.subr.bf16.mxu0 0
  %415 = vmatpush1.bf16.msra.mxu0 0
  %416 = vmatprep.subr.bf16.mxu0 0
  %417 = vmatpush1.bf16.msra.mxu0 0
  %418 = vmatprep.subr.bf16.mxu0 0
  %419 = vmatpush1.bf16.msra.mxu0 0
  %420 = vmatprep.subr.bf16.mxu0 0
  %421 = vmatpush1.bf16.msra.mxu0 0
  %422 = vmatprep.subr.bf16.mxu0 0
  %423 = vmatpush1.bf16.msra.mxu0 0
  %424 = vmatprep.subr.bf16.mxu0 0
  %425 = vmatpush1.bf16.msra.mxu0 0
  %426 = vmatprep.subr.bf16.mxu0 0
  %427 = vmatpush1.bf16.msra.mxu0 0
  %428 = vmatprep.mubr.bf16.mxu0 0
  %429 = vmatmul.mubr.bf16.gmra.mrb[0].mxu0 %v394
  %v430 = vpop.f32.mrb[0].mxu0
  %v431 = vadd.f32 0.0, %v430
  %v432 = vpop.f32.mrb[0].mxu0
  %v433 = vpop.f32.mrb[0].mxu0
  %v434 = vpop.f32.mrb[0].mxu0
  %435 = vdwg.mxu0
  %v436 = vadd.f32 %v391, %v431
  %v437 = vxor.u32 %v436, 2147483648
  %v438 = vmul.f32 %v437, 1.442695
  %v439 = vpow.pop %v438
  %v440 = vadd.f32 %v439, 1.0
  %v441 = vrcp.pop %v440
  %v442 = vmul.f32 1.0, %v441
  %v443 = vtanh.pop %v436
  %445 = vrot.lane.b32.xlu0 %v387, 32
  %v446 = vpop.permute.xlu0 %445
  %v448 = vmul.f32 %v442, %v446
  %450 = vrot.lane.b32.xlu0 %v443, 32
  %v451 = vpop.permute.xlu0 %450
  %v453 = vmul.f32 %v442, %v451
  %455 = vrot.lane.b32.xlu0 %v453, 32
  %v456 = vpop.permute.xlu0 %455
  %v458 = vadd.f32 %v448, %v456
  %v459 = vtanh.pop %v458
  %461 = vrot.lane.b32.xlu0 %v459, 32
  %v462 = vpop.permute.xlu0 %461
  %v464 = vmul.f32 %v442, %v462
  %466 = vrot.lane.b32.xlu0 %v464, 64
  %v467 = vpop.permute.xlu0 %466
  %v469 = vsel %vm202, %v467, %v382
  %471 = vrot.lane.b32.xlu0 %v458, 96
  %v472 = vpop.permute.xlu0 %471
  %v474 = vsel %vm202, %v472, %v387
  %v475 = vsel %vm202, %v467, 0.0
  %476 = vst.msk [vmem:[%s5 + $0x10] sm:$0xff] %vm300, %v475
  %477 = vst.msk [vmem:[%s5 + $0x28] sm:$0xff] %vm302, %v475
  %v478 = vsel %vm187, %v154, %v159
  %v479 = vpack.c.bf16 %v469, %v469
  %v481 = vsel %vm221, %v479, 0
  %483 = vmatprep.subr.bf16.mxu0 0
  %484 = vmatpush1.bf16.msra.mxu0 %v217
  %485 = vmatprep.subr.bf16.mxu0 0
  %486 = vmatpush1.bf16.msra.mxu0 %v218
  %487 = vmatprep.subr.bf16.mxu0 0
  %488 = vmatpush1.bf16.msra.mxu0 0
  %489 = vmatprep.subr.bf16.mxu0 0
  %490 = vmatpush1.bf16.msra.mxu0 0
  %491 = vmatprep.subr.bf16.mxu0 0
  %492 = vmatpush1.bf16.msra.mxu0 0
  %493 = vmatprep.subr.bf16.mxu0 0
  %494 = vmatpush1.bf16.msra.mxu0 0
  %495 = vmatprep.subr.bf16.mxu0 0
  %496 = vmatpush1.bf16.msra.mxu0 0
  %497 = vmatprep.subr.bf16.mxu0 0
  %498 = vmatpush1.bf16.msra.mxu0 0
  %499 = vmatprep.subr.bf16.mxu0 0
  %500 = vmatpush1.bf16.msra.mxu0 0
  %501 = vmatprep.subr.bf16.mxu0 0
  %502 = vmatpush1.bf16.msra.mxu0 0
  %503 = vmatprep.subr.bf16.mxu0 0
  %504 = vmatpush1.bf16.msra.mxu0 0
  %505 = vmatprep.subr.bf16.mxu0 0
  %506 = vmatpush1.bf16.msra.mxu0 0
  %507 = vmatprep.subr.bf16.mxu0 0
  %508 = vmatpush1.bf16.msra.mxu0 0
  %509 = vmatprep.subr.bf16.mxu0 0
  %510 = vmatpush1.bf16.msra.mxu0 0
  %511 = vmatprep.subr.bf16.mxu0 0
  %512 = vmatpush1.bf16.msra.mxu0 0
  %513 = vmatprep.subr.bf16.mxu0 0
  %514 = vmatpush1.bf16.msra.mxu0 0
  %515 = vmatprep.mubr.bf16.mxu0 0
  %516 = vmatmul.mubr.bf16.gmra.mrb[0].mxu0 %v481
  %v517 = vpop.f32.mrb[0].mxu0
  %v518 = vadd.f32 0.0, %v517
  %v519 = vpop.f32.mrb[0].mxu0
  %v520 = vpop.f32.mrb[0].mxu0
  %v521 = vpop.f32.mrb[0].mxu0
  %522 = vdwg.mxu0
  %v523 = vadd.f32 %v478, %v518
  %v524 = vxor.u32 %v523, 2147483648
  %v525 = vmul.f32 %v524, 1.442695
  %v526 = vpow.pop %v525
  %v527 = vadd.f32 %v526, 1.0
  %v528 = vrcp.pop %v527
  %v529 = vmul.f32 1.0, %v528
  %v530 = vtanh.pop %v523
  %532 = vrot.lane.b32.xlu0 %v474, 32
  %v533 = vpop.permute.xlu0 %532
  %v535 = vmul.f32 %v529, %v533
  %537 = vrot.lane.b32.xlu0 %v530, 32
  %v538 = vpop.permute.xlu0 %537
  %v540 = vmul.f32 %v529, %v538
  %542 = vrot.lane.b32.xlu0 %v540, 32
  %v543 = vpop.permute.xlu0 %542
  %v545 = vadd.f32 %v535, %v543
  %v546 = vtanh.pop %v545
  %548 = vrot.lane.b32.xlu0 %v546, 32
  %v549 = vpop.permute.xlu0 %548
  %v551 = vmul.f32 %v529, %v549
  %553 = vrot.lane.b32.xlu0 %v551, 64
  %v554 = vpop.permute.xlu0 %553
  %v556 = vsel %vm203, %v554, %v469
  %558 = vrot.lane.b32.xlu0 %v545, 96
  %v559 = vpop.permute.xlu0 %558
  %v561 = vsel %vm203, %v559, %v474
  %v562 = vsel %vm203, %v554, 0.0
  %563 = vst.msk [vmem:[%s5 + $0x18] sm:$0xff] %vm300, %v562
  %564 = vst.msk [vmem:[%s5 + $0x20] sm:$0xff] %vm302, %v562
  %v565 = vsel %vm187, %v159, %v154
  %v566 = vpack.c.bf16 %v556, %v556
  %v568 = vsel %vm221, %v566, 0
  %570 = vmatprep.subr.bf16.mxu0 0
  %571 = vmatpush1.bf16.msra.mxu0 %v217
  %572 = vmatprep.subr.bf16.mxu0 0
  %573 = vmatpush1.bf16.msra.mxu0 %v218
  %574 = vmatprep.subr.bf16.mxu0 0
  %575 = vmatpush1.bf16.msra.mxu0 0
  %576 = vmatprep.subr.bf16.mxu0 0
  %577 = vmatpush1.bf16.msra.mxu0 0
  %578 = vmatprep.subr.bf16.mxu0 0
  %579 = vmatpush1.bf16.msra.mxu0 0
  %580 = vmatprep.subr.bf16.mxu0 0
  %581 = vmatpush1.bf16.msra.mxu0 0
  %582 = vmatprep.subr.bf16.mxu0 0
  %583 = vmatpush1.bf16.msra.mxu0 0
  %584 = vmatprep.subr.bf16.mxu0 0
  %585 = vmatpush1.bf16.msra.mxu0 0
  %586 = vmatprep.subr.bf16.mxu0 0
  %587 = vmatpush1.bf16.msra.mxu0 0
  %588 = vmatprep.subr.bf16.mxu0 0
  %589 = vmatpush1.bf16.msra.mxu0 0
  %590 = vmatprep.subr.bf16.mxu0 0
  %591 = vmatpush1.bf16.msra.mxu0 0
  %592 = vmatprep.subr.bf16.mxu0 0
  %593 = vmatpush1.bf16.msra.mxu0 0
  %594 = vmatprep.subr.bf16.mxu0 0
  %595 = vmatpush1.bf16.msra.mxu0 0
  %596 = vmatprep.subr.bf16.mxu0 0
  %597 = vmatpush1.bf16.msra.mxu0 0
  %598 = vmatprep.subr.bf16.mxu0 0
  %599 = vmatpush1.bf16.msra.mxu0 0
  %600 = vmatprep.subr.bf16.mxu0 0
  %601 = vmatpush1.bf16.msra.mxu0 0
  %602 = vmatprep.mubr.bf16.mxu0 0
  %603 = vmatmul.mubr.bf16.gmra.mrb[0].mxu0 %v568
  %v604 = vpop.f32.mrb[0].mxu0
  %v605 = vadd.f32 0.0, %v604
  %v606 = vpop.f32.mrb[0].mxu0
  %v607 = vpop.f32.mrb[0].mxu0
  %v608 = vpop.f32.mrb[0].mxu0
  %609 = vdwg.mxu0
  %v610 = vadd.f32 %v565, %v605
  %v611 = vxor.u32 %v610, 2147483648
  %v612 = vmul.f32 %v611, 1.442695
  %v613 = vpow.pop %v612
  %v614 = vadd.f32 %v613, 1.0
  %v615 = vrcp.pop %v614
  %v616 = vmul.f32 1.0, %v615
  %v617 = vtanh.pop %v610
  %619 = vrot.lane.b32.xlu0 %v561, 32
  %v620 = vpop.permute.xlu0 %619
  %v622 = vmul.f32 %v616, %v620
  %624 = vrot.lane.b32.xlu0 %v617, 32
  %v625 = vpop.permute.xlu0 %624
  %v627 = vmul.f32 %v616, %v625
  %629 = vrot.lane.b32.xlu0 %v627, 32
  %v630 = vpop.permute.xlu0 %629
  %v632 = vadd.f32 %v622, %v630
  %v633 = vtanh.pop %v632
  %635 = vrot.lane.b32.xlu0 %v633, 32
  %v636 = vpop.permute.xlu0 %635
  %v638 = vmul.f32 %v616, %v636
  %640 = vrot.lane.b32.xlu0 %v638, 64
  %v641 = vpop.permute.xlu0 %640
  %v643 = vsel %vm204, %v641, %v556
  %645 = vrot.lane.b32.xlu0 %v632, 96
  %v646 = vpop.permute.xlu0 %645
  %v648 = vsel %vm204, %v646, %v561
  %v649 = vsel %vm204, %v641, 0.0
  %650 = vst.msk [vmem:[%s5 + $0x20] sm:$0xff] %vm300, %v649
  %651 = vst.msk [vmem:[%s5 + $0x18] sm:$0xff] %vm302, %v649
  %v652 = vsel %vm187, %v162, %v151
  %v653 = vpack.c.bf16 %v643, %v643
  %v655 = vsel %vm221, %v653, 0
  %657 = vmatprep.subr.bf16.mxu0 0
  %658 = vmatpush1.bf16.msra.mxu0 %v217
  %659 = vmatprep.subr.bf16.mxu0 0
  %660 = vmatpush1.bf16.msra.mxu0 %v218
  %661 = vmatprep.subr.bf16.mxu0 0
  %662 = vmatpush1.bf16.msra.mxu0 0
  %663 = vmatprep.subr.bf16.mxu0 0
  %664 = vmatpush1.bf16.msra.mxu0 0
  %665 = vmatprep.subr.bf16.mxu0 0
  %666 = vmatpush1.bf16.msra.mxu0 0
  %667 = vmatprep.subr.bf16.mxu0 0
  %668 = vmatpush1.bf16.msra.mxu0 0
  %669 = vmatprep.subr.bf16.mxu0 0
  %670 = vmatpush1.bf16.msra.mxu0 0
  %671 = vmatprep.subr.bf16.mxu0 0
  %672 = vmatpush1.bf16.msra.mxu0 0
  %673 = vmatprep.subr.bf16.mxu0 0
  %674 = vmatpush1.bf16.msra.mxu0 0
  %675 = vmatprep.subr.bf16.mxu0 0
  %676 = vmatpush1.bf16.msra.mxu0 0
  %677 = vmatprep.subr.bf16.mxu0 0
  %678 = vmatpush1.bf16.msra.mxu0 0
  %679 = vmatprep.subr.bf16.mxu0 0
  %680 = vmatpush1.bf16.msra.mxu0 0
  %681 = vmatprep.subr.bf16.mxu0 0
  %682 = vmatpush1.bf16.msra.mxu0 0
  %683 = vmatprep.subr.bf16.mxu0 0
  %684 = vmatpush1.bf16.msra.mxu0 0
  %685 = vmatprep.subr.bf16.mxu0 0
  %686 = vmatpush1.bf16.msra.mxu0 0
  %687 = vmatprep.subr.bf16.mxu0 0
  %688 = vmatpush1.bf16.msra.mxu0 0
  %689 = vmatprep.mubr.bf16.mxu0 0
  %690 = vmatmul.mubr.bf16.gmra.mrb[0].mxu0 %v655
  %v691 = vpop.f32.mrb[0].mxu0
  %v692 = vadd.f32 0.0, %v691
  %v693 = vpop.f32.mrb[0].mxu0
  %v694 = vpop.f32.mrb[0].mxu0
  %v695 = vpop.f32.mrb[0].mxu0
  %696 = vdwg.mxu0
  %v697 = vadd.f32 %v652, %v692
  %v698 = vxor.u32 %v697, 2147483648
  %v699 = vmul.f32 %v698, 1.442695
  %v700 = vpow.pop %v699
  %v701 = vadd.f32 %v700, 1.0
  %v702 = vrcp.pop %v701
  %v703 = vmul.f32 1.0, %v702
  %v704 = vtanh.pop %v697
  %706 = vrot.lane.b32.xlu0 %v648, 32
  %v707 = vpop.permute.xlu0 %706
  %v709 = vmul.f32 %v703, %v707
  %711 = vrot.lane.b32.xlu0 %v704, 32
  %v712 = vpop.permute.xlu0 %711
  %v714 = vmul.f32 %v703, %v712
  %716 = vrot.lane.b32.xlu0 %v714, 32
  %v717 = vpop.permute.xlu0 %716
  %v719 = vadd.f32 %v709, %v717
  %v720 = vtanh.pop %v719
  %722 = vrot.lane.b32.xlu0 %v720, 32
  %v723 = vpop.permute.xlu0 %722
  %v725 = vmul.f32 %v703, %v723
  %727 = vrot.lane.b32.xlu0 %v725, 64
  %v728 = vpop.permute.xlu0 %727
  %v730 = vsel %vm205, %v728, %v643
  %732 = vrot.lane.b32.xlu0 %v719, 96
  %v733 = vpop.permute.xlu0 %732
  %v735 = vsel %vm205, %v733, %v648
  %v736 = vsel %vm205, %v728, 0.0
  %737 = vst.msk [vmem:[%s5 + $0x28] sm:$0xff] %vm300, %v736
  %738 = vst.msk [vmem:[%s5 + $0x10] sm:$0xff] %vm302, %v736
  %v739 = vsel %vm187, %v167, %v146
  %v740 = vpack.c.bf16 %v730, %v730
  %v742 = vsel %vm221, %v740, 0
  %744 = vmatprep.subr.bf16.mxu0 0
  %745 = vmatpush1.bf16.msra.mxu0 %v217
  %746 = vmatprep.subr.bf16.mxu0 0
  %747 = vmatpush1.bf16.msra.mxu0 %v218
  %748 = vmatprep.subr.bf16.mxu0 0
  %749 = vmatpush1.bf16.msra.mxu0 0
  %750 = vmatprep.subr.bf16.mxu0 0
  %751 = vmatpush1.bf16.msra.mxu0 0
  %752 = vmatprep.subr.bf16.mxu0 0
  %753 = vmatpush1.bf16.msra.mxu0 0
  %754 = vmatprep.subr.bf16.mxu0 0
  %755 = vmatpush1.bf16.msra.mxu0 0
  %756 = vmatprep.subr.bf16.mxu0 0
  %757 = vmatpush1.bf16.msra.mxu0 0
  %758 = vmatprep.subr.bf16.mxu0 0
  %759 = vmatpush1.bf16.msra.mxu0 0
  %760 = vmatprep.subr.bf16.mxu0 0
  %761 = vmatpush1.bf16.msra.mxu0 0
  %762 = vmatprep.subr.bf16.mxu0 0
  %763 = vmatpush1.bf16.msra.mxu0 0
  %764 = vmatprep.subr.bf16.mxu0 0
  %765 = vmatpush1.bf16.msra.mxu0 0
  %766 = vmatprep.subr.bf16.mxu0 0
  %767 = vmatpush1.bf16.msra.mxu0 0
  %768 = vmatprep.subr.bf16.mxu0 0
  %769 = vmatpush1.bf16.msra.mxu0 0
  %770 = vmatprep.subr.bf16.mxu0 0
  %771 = vmatpush1.bf16.msra.mxu0 0
  %772 = vmatprep.subr.bf16.mxu0 0
  %773 = vmatpush1.bf16.msra.mxu0 0
  %774 = vmatprep.subr.bf16.mxu0 0
  %775 = vmatpush1.bf16.msra.mxu0 0
  %776 = vmatprep.mubr.bf16.mxu0 0
  %777 = vmatmul.mubr.bf16.gmra.mrb[0].mxu0 %v742
  %v778 = vpop.f32.mrb[0].mxu0
  %v779 = vadd.f32 0.0, %v778
  %v780 = vpop.f32.mrb[0].mxu0
  %v781 = vpop.f32.mrb[0].mxu0
  %v782 = vpop.f32.mrb[0].mxu0
  %783 = vdwg.mxu0
  %v784 = vadd.f32 %v739, %v779
  %v785 = vxor.u32 %v784, 2147483648
  %v786 = vmul.f32 %v785, 1.442695
  %v787 = vpow.pop %v786
  %v788 = vadd.f32 %v787, 1.0
  %v789 = vrcp.pop %v788
  %v790 = vmul.f32 1.0, %v789
  %v791 = vtanh.pop %v784
  %793 = vrot.lane.b32.xlu0 %v735, 32
  %v794 = vpop.permute.xlu0 %793
  %v796 = vmul.f32 %v790, %v794
  %798 = vrot.lane.b32.xlu0 %v791, 32
  %v799 = vpop.permute.xlu0 %798
  %v801 = vmul.f32 %v790, %v799
  %803 = vrot.lane.b32.xlu0 %v801, 32
  %v804 = vpop.permute.xlu0 %803
  %v806 = vadd.f32 %v796, %v804
  %v807 = vtanh.pop %v806
  %809 = vrot.lane.b32.xlu0 %v807, 32
  %v810 = vpop.permute.xlu0 %809
  %v812 = vmul.f32 %v790, %v810
  %814 = vrot.lane.b32.xlu0 %v812, 64
  %v815 = vpop.permute.xlu0 %814
  %v817 = vsel %vm206, %v815, %v730
  %819 = vrot.lane.b32.xlu0 %v806, 96
  %v820 = vpop.permute.xlu0 %819
  %v822 = vsel %vm206, %v820, %v735
  %v823 = vsel %vm206, %v815, 0.0
  %824 = vst.msk [vmem:[%s5 + $0x30] sm:$0xff] %vm300, %v823
  %825 = vst.msk [vmem:[%s5 + $0x8] sm:$0xff] %vm302, %v823
  %v826 = vsel %vm187, %v170, %v143
  %v827 = vpack.c.bf16 %v817, %v817
  %v829 = vsel %vm221, %v827, 0
  %831 = vmatprep.subr.bf16.mxu0 0
  %832 = vmatpush1.bf16.msra.mxu0 %v217
  %833 = vmatprep.subr.bf16.mxu0 0
  %834 = vmatpush1.bf16.msra.mxu0 %v218
  %835 = vmatprep.subr.bf16.mxu0 0
  %836 = vmatpush1.bf16.msra.mxu0 0
  %837 = vmatprep.subr.bf16.mxu0 0
  %838 = vmatpush1.bf16.msra.mxu0 0
  %839 = vmatprep.subr.bf16.mxu0 0
  %840 = vmatpush1.bf16.msra.mxu0 0
  %841 = vmatprep.subr.bf16.mxu0 0
  %842 = vmatpush1.bf16.msra.mxu0 0
  %843 = vmatprep.subr.bf16.mxu0 0
  %844 = vmatpush1.bf16.msra.mxu0 0
  %845 = vmatprep.subr.bf16.mxu0 0
  %846 = vmatpush1.bf16.msra.mxu0 0
  %847 = vmatprep.subr.bf16.mxu0 0
  %848 = vmatpush1.bf16.msra.mxu0 0
  %849 = vmatprep.subr.bf16.mxu0 0
  %850 = vmatpush1.bf16.msra.mxu0 0
  %851 = vmatprep.subr.bf16.mxu0 0
  %852 = vmatpush1.bf16.msra.mxu0 0
  %853 = vmatprep.subr.bf16.mxu0 0
  %854 = vmatpush1.bf16.msra.mxu0 0
  %855 = vmatprep.subr.bf16.mxu0 0
  %856 = vmatpush1.bf16.msra.mxu0 0
  %857 = vmatprep.subr.bf16.mxu0 0
  %858 = vmatpush1.bf16.msra.mxu0 0
  %859 = vmatprep.subr.bf16.mxu0 0
  %860 = vmatpush1.bf16.msra.mxu0 0
  %861 = vmatprep.subr.bf16.mxu0 0
  %862 = vmatpush1.bf16.msra.mxu0 0
  %863 = vmatprep.mubr.bf16.mxu0 0
  %864 = vmatmul.mubr.bf16.gmra.mrb[0].mxu0 %v829
  %v865 = vpop.f32.mrb[0].mxu0
  %v866 = vadd.f32 0.0, %v865
  %v867 = vpop.f32.mrb[0].mxu0
  %v868 = vpop.f32.mrb[0].mxu0
  %v869 = vpop.f32.mrb[0].mxu0
  %870 = vdwg.mxu0
  %v871 = vadd.f32 %v826, %v866
  %v872 = vxor.u32 %v871, 2147483648
  %v873 = vmul.f32 %v872, 1.442695
  %v874 = vpow.pop %v873
  %v875 = vadd.f32 %v874, 1.0
  %v876 = vrcp.pop %v875
  %v877 = vmul.f32 1.0, %v876
  %v878 = vtanh.pop %v871
  %880 = vrot.lane.b32.xlu0 %v822, 32
  %v881 = vpop.permute.xlu0 %880
  %v883 = vmul.f32 %v877, %v881
  %885 = vrot.lane.b32.xlu0 %v878, 32
  %v886 = vpop.permute.xlu0 %885
  %v888 = vmul.f32 %v877, %v886
  %890 = vrot.lane.b32.xlu0 %v888, 32
  %v891 = vpop.permute.xlu0 %890
  %v893 = vadd.f32 %v883, %v891
  %v894 = vtanh.pop %v893
  %896 = vrot.lane.b32.xlu0 %v894, 32
  %v897 = vpop.permute.xlu0 %896
  %v899 = vmul.f32 %v877, %v897
  %901 = vrot.lane.b32.xlu0 %v899, 64
  %v902 = vpop.permute.xlu0 %901
  %v904 = vsel %vm207, %v902, %v817
  %v905 = vsel %vm207, %v902, 0.0
  %906 = vst.msk [vmem:[%s5 + $0x38] sm:$0xff] %vm300, %v905
  %907 = vst.msk [vmem:[%s5] sm:$0xff] %vm302, %v905
  %908 = vst.msk [vmem:[%s6] sm:$0xff] %vm221, %v904
  // Predicated region
  $region22: #{rnn_encoder_forward.1} parent=0 // pred_check
    _
  $region23: #{rnn_encoder_forward.1} parent=0 // pred_check_branch
    %910 = sbr.rel (0) target = $region25
  $region24: #{rnn_encoder_forward.1} parent=0 // pred_region
    _
  $region25: #{rnn_encoder_forward.1} parent=0 // pred_fallthru
    _
  // Predicated region
  $region26: #{rnn_encoder_forward.1} parent=0 // pred_check
    _
  $region27: #{rnn_encoder_forward.1} parent=0 // pred_check_branch
    %912 = sbr.rel (0) target = $region29
  $region28: #{rnn_encoder_forward.1} parent=0 // pred_region
    _
  $region29: #{rnn_encoder_forward.1} parent=0 // pred_fallthru
    _
  // Predicated region
  $region30: #{rnn_encoder_forward.1} parent=0 // pred_check
    _
  $region31: #{rnn_encoder_forward.1} parent=0 // pred_check_branch
    %914 = sbr.rel (0) target = $region33
  $region32: #{rnn_encoder_forward.1} parent=0 // pred_region
    _
  $region33: #{rnn_encoder_forward.1} parent=0 // pred_fallthru
    _
  // Predicated region
  $region34: #{rnn_encoder_forward.1} parent=0 // pred_check
    _
  $region35: #{rnn_encoder_forward.1} parent=0 // pred_check_branch
    %916 = sbr.rel (0) target = $region37
  $region36: #{rnn_encoder_forward.1} parent=0 // pred_region
    _
  $region37: #{rnn_encoder_forward.1} parent=0 // pred_fallthru
    _

</llo_original>
